<compile_context>
chip_gen: v7x
topology: tpu7x:2x2x1
jax: 0.10.0
libtpu: 0.0.40
codegen_flags: <defaults>
</compile_context>

<pallas_src>
import functools

import jax
import jax.numpy as jnp
from jax.experimental import pallas as pl
from jax.experimental.pallas import tpu as pltpu

KS = 7
PAD = (KS - 1) // 2  # 3


def _spatial_attn_kernel(x_ref, w_ref, ab_ref, o_ref, pp_ref, *, H, W, Nb):
    # x_ref : VMEM (Nb, C, H*W)        input block, spatial dims flattened
    # w_ref : VMEM (2*Nb, KS*KS) f32   per-row conv taps: rows [0:Nb] = w_max,
    #                                  rows [Nb:2*Nb] = w_mean / C
    # ab_ref: SMEM (2,) f32            folded BN scale a, shift b
    # o_ref : VMEM (Nb, C, H*W)
    # pp_ref: VMEM scratch (2*Nb, H*W + 2*OFF) f32  zero-halo pooled maps (flat)
    HW = H * W
    OFF = PAD * W + PAD  # halo wide enough for the largest |(dh-3)*W + (dw-3)|

    x = x_ref[...].astype(jnp.float32)  # (Nb, C, HW), lane-dense

    # Channel pool: max + sum over C (1/C is folded into the mean-tap weights).
    cmax = jnp.max(x, axis=1)  # (Nb, HW)
    csum = jnp.sum(x, axis=1)  # (Nb, HW)

    # Zero only the two OFF-wide halo regions; the [OFF:OFF+HW] interior is
    # fully overwritten below every step (doing this per step is megacore-safe,
    # unlike a program_id==0 guard on a "parallel" grid axis).
    zeros_halo = jnp.zeros((2 * Nb, OFF), jnp.float32)
    pp_ref[:, 0:OFF] = zeros_halo
    pp_ref[:, OFF + HW:OFF + HW + OFF] = zeros_halo
    pp_ref[0:Nb, OFF:OFF + HW] = cmax
    pp_ref[Nb:2 * Nb, OFF:OFF + HW] = csum

    # Column-validity masks, generated in-kernel (no HBM mask input).
    p = jax.lax.broadcasted_iota(jnp.int32, (2 * Nb, HW), 1)
    if (W & (W - 1)) == 0:
        col = jnp.bitwise_and(p, W - 1)
    else:
        col = jax.lax.rem(p, W)

    # 7x7 conv, fully unrolled: 49 taps on the stacked (2*Nb, HW) pooled maps
    # with per-row tap weights.  Row overflow lands in the zero halo, column
    # overflow is killed by the per-dw masks.  Taps are read straight from the
    # scratch ref; part_a/part_b and acc0/acc1 keep 4 independent add chains.
    w_all = w_ref[...]  # (2*Nb, KS*KS)
    acc0 = jnp.zeros((2 * Nb, HW), jnp.float32)
    acc1 = jnp.zeros((2 * Nb, HW), jnp.float32)
    for dw in range(KS):
        d = dw - PAD
        mask = ((col >= -d) & (col < W - d)).astype(jnp.float32)  # (2*Nb, HW)
        part_a = jnp.zeros((2 * Nb, HW), jnp.float32)
        part_b = jnp.zeros((2 * Nb, HW), jnp.float32)
        for dh in range(KS):
            s = OFF + (dh - PAD) * W + d
            t = dh * KS + dw
            term = w_all[:, t:t + 1] * pp_ref[:, s:s + HW]  # (2*Nb, HW)
            if dh % 2 == 0:
                part_a = part_a + term
            else:
                part_b = part_b + term
        if dw % 2 == 0:
            acc0 = acc0 + mask * (part_a + part_b)
        else:
            acc1 = acc1 + mask * (part_a + part_b)
    acc = acc0 + acc1                           # (2*Nb, HW)
    conv = acc[0:Nb, :] + acc[Nb:2 * Nb, :]     # (Nb, HW): max-half + mean-half

    # Folded conv-bias + eval-mode BatchNorm, then sigmoid gate and apply.
    scale = jax.nn.sigmoid(ab_ref[0] * conv + ab_ref[1])  # (Nb, HW)
    o_ref[...] = (x * scale[:, None, :]).astype(o_ref.dtype)


@jax.jit
def spatial_attn(x, conv_w, conv_b, bn_gamma, bn_beta, bn_mean, bn_var):
    """x: (N, C, H, W). conv_w: (1, 2, 7, 7). Scalars: conv_b, bn_*."""
    N, C, H, W = x.shape
    HW = H * W
    OFF = PAD * W + PAD
    eps = 1e-5
    itemsize = int(x.dtype.itemsize)

    # Batch elements per grid step: fill vreg sublanes (2*Nb pooled rows) while
    # keeping each in/out block in the VMEM sweet spot (~<=4 MiB per block).
    per_batch_bytes = C * HW * itemsize
    Nb = max(1, min(N, 8, (4 * 1024 * 1024) // max(per_batch_bytes, 1)))
    n_blocks = pl.cdiv(N, Nb)

    # Fold conv bias + BatchNorm (eval) into y = a * conv + b, and fold 1/C
    # into the mean-channel taps (kernel computes a channel sum).
    a = bn_gamma / jnp.sqrt(bn_var + eps)
    b = bn_beta + a * (conv_b - bn_mean)
    ab = jnp.stack([a, b]).reshape(2).astype(jnp.float32)
    w_max = conv_w[0, 0].reshape(1, -1)            # (1, 49)
    w_mean = (conv_w[0, 1] / C).reshape(1, -1)     # (1, 49)
    w_rows = jnp.concatenate([jnp.tile(w_max, (Nb, 1)),
                              jnp.tile(w_mean, (Nb, 1))],
                             axis=0).astype(jnp.float32)  # (2*Nb, 49)

    # Flatten spatial dims so the big load and the gating store are lane-dense
    # (H*W on the lane axis). This reshape is free in HBM (contiguous NCHW).
    # I/O stays in the caller dtype (bf16 path supported); kernel math is f32.
    x_flat = x.reshape(N, C, HW)
    out_dtype = x_flat.dtype

    kernel = functools.partial(_spatial_attn_kernel, H=H, W=W, Nb=Nb)

    # VMEM budget derived from actual block sizes (double-buffered in/out/w +
    # scratch), clamped to a per-generation-safe range instead of a fixed cap.
    block_bytes = Nb * C * HW * itemsize
    vmem_needed = (2 * 2 * block_bytes
                   + 2 * (2 * Nb) * KS * KS * 4
                   + (2 * Nb) * (HW + 2 * OFF) * 4)
    vmem_limit = int(min(100 * 1024 * 1024,
                         max(16 * 1024 * 1024, 2 * vmem_needed + (4 << 20))))

    flops = int(N * HW * (4 * C + 4 * KS * KS + 8))
    bytes_accessed = int(2 * N * C * HW * itemsize)

    out = pl.pallas_call(
        kernel,
        out_shape=jax.ShapeDtypeStruct((N, C, HW), out_dtype),
        grid=(n_blocks,),
        in_specs=[
            pl.BlockSpec((Nb, C, HW), lambda n: (n, 0, 0)),
            pl.BlockSpec((2 * Nb, KS * KS), lambda n: (0, 0)),
            pl.BlockSpec(memory_space=pltpu.MemorySpace.SMEM),
        ],
        out_specs=pl.BlockSpec((Nb, C, HW), lambda n: (n, 0, 0)),
        scratch_shapes=[pltpu.VMEM((2 * Nb, HW + 2 * OFF), jnp.float32)],
        compiler_params=pltpu.CompilerParams(
            dimension_semantics=("parallel",),
            vmem_limit_bytes=vmem_limit),
        cost_estimate=pl.CostEstimate(
            flops=flops, transcendentals=int(N * HW),
            bytes_accessed=bytes_accessed),
    )(x_flat, w_rows, ab)
    return out.reshape(N, C, H, W)


def _reference(x, conv_w, conv_b, bn_gamma, bn_beta, bn_mean, bn_var):
    """Pure-JAX reference mirroring the PyTorch forward (BN in eval mode)."""
    eps = 1e-5
    cmax = jnp.max(x, axis=1, keepdims=True)
    cmean = jnp.mean(x, axis=1, keepdims=True)
    pooled = jnp.concatenate([cmax, cmean], axis=1)  # (N, 2, H, W)
    conv = jax.lax.conv_general_dilated(
        pooled, conv_w, window_strides=(1, 1), padding=((PAD, PAD), (PAD, PAD)),
        dimension_numbers=("NCHW", "OIHW", "NCHW")) + conv_b
    y = bn_gamma * (conv - bn_mean) / jnp.sqrt(bn_var + eps) + bn_beta
    scale = jax.nn.sigmoid(y)  # (N, 1, H, W)
    return x * scale


if __name__ == "__main__":
    key = jax.random.PRNGKey(0)
    k_x, k_w, k_b, k_g, k_bt, k_m, k_v = jax.random.split(key, 7)

    N, C, H, W = 2, 4, 16, 16
    x = jax.random.normal(k_x, (N, C, H, W), dtype=jnp.float32)

    # Deterministic synthetic parameters (Conv2d(2,1,7) + BatchNorm2d(1)).
    conv_w = jax.random.normal(k_w, (1, 2, KS, KS), dtype=jnp.float32) * 0.1
    conv_b = jax.random.normal(k_b, (), dtype=jnp.float32) * 0.1
    bn_gamma = 1.0 + 0.1 * jax.random.normal(k_g, (), dtype=jnp.float32)
    bn_beta = 0.1 * jax.random.normal(k_bt, (), dtype=jnp.float32)
    bn_mean = 0.1 * jax.random.normal(k_m, (), dtype=jnp.float32)
    bn_var = 1.0 + 0.1 * jax.random.uniform(k_v, (), dtype=jnp.float32)

    out = spatial_attn(x, conv_w, conv_b, bn_gamma, bn_beta, bn_mean, bn_var)
    out = jax.block_until_ready(out)

    ref = _reference(x, conv_w, conv_b, bn_gamma, bn_beta, bn_mean, bn_var)
    assert out.shape == (N, C, H, W)
    assert jnp.allclose(out, ref, atol=1e-4, rtol=1e-4), float(
        jnp.max(jnp.abs(out - ref)))

    print("KERNEL_OK")
</pallas_src>

<mosaic_0001>
module attributes {stable_mosaic.version = 11 : i64} {
  func.func @_spatial_attn_kernel(%arg0: i32, %arg1: memref<2x4x256xf32, #tpu.memory_space<vmem>>, %arg2: memref<4x49xf32, #tpu.memory_space<vmem>>, %arg3: memref<2xf32, #tpu.memory_space<smem>>, %arg4: memref<2x4x256xf32, #tpu.memory_space<vmem>>, %arg5: memref<4x358xf32, #tpu.memory_space<vmem>>) attributes {dimension_semantics = [#tpu.dimension_semantics<parallel>], iteration_bounds = array<i64: 1>, scalar_prefetch = 0 : i64, scratch_operands = 1 : i64, tpu.core_type = #tpu.core_type<tc>, window_params = [{transform_indices = @transform_0, window_bounds = array<i64: 2, 4, 256>}, {pipeline_mode = #tpu.pipeline_mode<synchronous>, transform_indices = @transform_1, window_bounds = array<i64: 4, 49>}, {transform_indices = @transform_2, window_bounds = array<i64: 2>}, {transform_indices = @transform_3, window_bounds = array<i64: 2, 4, 256>}]} {
    %c0 = arith.constant 0 : index
    %c0_0 = arith.constant 0 : index
    %c0_1 = arith.constant 0 : index
    %0 = vector.load %arg1[%c0, %c0_0, %c0_1] : memref<2x4x256xf32, #tpu.memory_space<vmem>>, vector<2x4x256xf32>
    %cst = arith.constant dense<0xFF800000> : vector<2x256xf32>
    %1 = vector.multi_reduction <maximumf>, %0, %cst [1] : vector<2x4x256xf32> to vector<2x256xf32>
    %cst_2 = arith.constant dense<0.000000e+00> : vector<2x256xf32>
    %2 = vector.multi_reduction <add>, %0, %cst_2 [1] : vector<2x4x256xf32> to vector<2x256xf32>
    %cst_3 = arith.constant 0.000000e+00 : f32
    %3 = vector.broadcast %cst_3 : f32 to vector<4x51xf32>
    %c0_4 = arith.constant 0 : index
    %c0_5 = arith.constant 0 : index
    %4 = vector.load %arg5[%c0_4, %c0_5] : memref<4x358xf32, #tpu.memory_space<vmem>>, vector<4x51xf32>
    tpu.vector_store %arg5[%c0_4, %c0_5], %3 {strides = array<i32>} : memref<4x358xf32, #tpu.memory_space<vmem>>, vector<4x51xf32>,
    %c0_6 = arith.constant 0 : index
    %c307 = arith.constant 307 : index
    %5 = vector.load %arg5[%c0_6, %c307] : memref<4x358xf32, #tpu.memory_space<vmem>>, vector<4x51xf32>
    tpu.vector_store %arg5[%c0_6, %c307], %3 {strides = array<i32>} : memref<4x358xf32, #tpu.memory_space<vmem>>, vector<4x51xf32>,
    %c0_7 = arith.constant 0 : index
    %c51 = arith.constant 51 : index
    %6 = vector.load %arg5[%c0_7, %c51] : memref<4x358xf32, #tpu.memory_space<vmem>>, vector<2x256xf32>
    tpu.vector_store %arg5[%c0_7, %c51], %1 {strides = array<i32>} : memref<4x358xf32, #tpu.memory_space<vmem>>, vector<2x256xf32>,
    %c2 = arith.constant 2 : index
    %c51_8 = arith.constant 51 : index
    %7 = vector.load %arg5[%c2, %c51_8] : memref<4x358xf32, #tpu.memory_space<vmem>>, vector<2x256xf32>
    tpu.vector_store %arg5[%c2, %c51_8], %2 {strides = array<i32>} : memref<4x358xf32, #tpu.memory_space<vmem>>, vector<2x256xf32>,
    %8 = tpu.iota {dimensions = array<i32: 1>} : vector<4x256xi32>
    %c15_i32 = arith.constant 15 : i32
    %9 = vector.broadcast %c15_i32 : i32 to vector<4x256xi32>
    %10 = arith.andi %8, %9 : vector<4x256xi32>
    %c0_9 = arith.constant 0 : index
    %c0_10 = arith.constant 0 : index
    %11 = vector.load %arg2[%c0_9, %c0_10] : memref<4x49xf32, #tpu.memory_space<vmem>>, vector<4x49xf32>
    %cst_11 = arith.constant 0.000000e+00 : f32
    %12 = vector.broadcast %cst_11 : f32 to vector<4x256xf32>
    %cst_12 = arith.constant 0.000000e+00 : f32
    %13 = vector.broadcast %cst_12 : f32 to vector<4x256xf32>
    %c3_i32 = arith.constant 3 : i32
    %14 = vector.broadcast %c3_i32 : i32 to vector<4x256xi32>
    %15 = arith.cmpi sge, %10, %14 : vector<4x256xi32>
    %c19_i32 = arith.constant 19 : i32
    %16 = vector.broadcast %c19_i32 : i32 to vector<4x256xi32>
    %17 = arith.cmpi slt, %10, %16 : vector<4x256xi32>
    %18 = arith.andi %15, %17 : vector<4x256xi1>
    %19 = arith.extui %18 : vector<4x256xi1> to vector<4x256xi32>
    %20 = arith.sitofp %19 : vector<4x256xi32> to vector<4x256xf32>
    %cst_13 = arith.constant 0.000000e+00 : f32
    %21 = vector.broadcast %cst_13 : f32 to vector<4x256xf32>
    %cst_14 = arith.constant 0.000000e+00 : f32
    %22 = vector.broadcast %cst_14 : f32 to vector<4x256xf32>
    %23 = vector.extract_strided_slice %11 {offsets = [0, 0], sizes = [4, 1], strides = [1, 1]} : vector<4x49xf32> to vector<4x1xf32>
    %c0_15 = arith.constant 0 : index
    %c0_16 = arith.constant 0 : index
    %24 = vector.load %arg5[%c0_15, %c0_16] : memref<4x358xf32, #tpu.memory_space<vmem>>, vector<4x256xf32>
    %25 = vector.broadcast %23 : vector<4x1xf32> to vector<4x256xf32>
    %26 = arith.mulf %25, %24 : vector<4x256xf32>
    %27 = arith.addf %21, %26 : vector<4x256xf32>
    %28 = vector.extract_strided_slice %11 {offsets = [0, 7], sizes = [4, 1], strides = [1, 1]} : vector<4x49xf32> to vector<4x1xf32>
    %c0_17 = arith.constant 0 : index
    %c16 = arith.constant 16 : index
    %29 = vector.load %arg5[%c0_17, %c16] : memref<4x358xf32, #tpu.memory_space<vmem>>, vector<4x256xf32>
    %30 = vector.broadcast %28 : vector<4x1xf32> to vector<4x256xf32>
    %31 = arith.mulf %30, %29 : vector<4x256xf32>
    %32 = arith.addf %22, %31 : vector<4x256xf32>
    %33 = vector.extract_strided_slice %11 {offsets = [0, 14], sizes = [4, 1], strides = [1, 1]} : vector<4x49xf32> to vector<4x1xf32>
    %c0_18 = arith.constant 0 : index
    %c32 = arith.constant 32 : index
    %34 = vector.load %arg5[%c0_18, %c32] : memref<4x358xf32, #tpu.memory_space<vmem>>, vector<4x256xf32>
    %35 = vector.broadcast %33 : vector<4x1xf32> to vector<4x256xf32>
    %36 = arith.mulf %35, %34 : vector<4x256xf32>
    %37 = arith.addf %27, %36 : vector<4x256xf32>
    %38 = vector.extract_strided_slice %11 {offsets = [0, 21], sizes = [4, 1], strides = [1, 1]} : vector<4x49xf32> to vector<4x1xf32>
    %c0_19 = arith.constant 0 : index
    %c48 = arith.constant 48 : index
    %39 = vector.load %arg5[%c0_19, %c48] : memref<4x358xf32, #tpu.memory_space<vmem>>, vector<4x256xf32>
    %40 = vector.broadcast %38 : vector<4x1xf32> to vector<4x256xf32>
    %41 = arith.mulf %40, %39 : vector<4x256xf32>
    %42 = arith.addf %32, %41 : vector<4x256xf32>
    %43 = vector.extract_strided_slice %11 {offsets = [0, 28], sizes = [4, 1], strides = [1, 1]} : vector<4x49xf32> to vector<4x1xf32>
    %c0_20 = arith.constant 0 : index
    %c64 = arith.constant 64 : index
    %44 = vector.load %arg5[%c0_20, %c64] : memref<4x358xf32, #tpu.memory_space<vmem>>, vector<4x256xf32>
    %45 = vector.broadcast %43 : vector<4x1xf32> to vector<4x256xf32>
    %46 = arith.mulf %45, %44 : vector<4x256xf32>
    %47 = arith.addf %37, %46 : vector<4x256xf32>
    %48 = vector.extract_strided_slice %11 {offsets = [0, 35], sizes = [4, 1], strides = [1, 1]} : vector<4x49xf32> to vector<4x1xf32>
    %c0_21 = arith.constant 0 : index
    %c80 = arith.constant 80 : index
    %49 = vector.load %arg5[%c0_21, %c80] : memref<4x358xf32, #tpu.memory_space<vmem>>, vector<4x256xf32>
    %50 = vector.broadcast %48 : vector<4x1xf32> to vector<4x256xf32>
    %51 = arith.mulf %50, %49 : vector<4x256xf32>
    %52 = arith.addf %42, %51 : vector<4x256xf32>
    %53 = vector.extract_strided_slice %11 {offsets = [0, 42], sizes = [4, 1], strides = [1, 1]} : vector<4x49xf32> to vector<4x1xf32>
    %c0_22 = arith.constant 0 : index
    %c96 = arith.constant 96 : index
    %54 = vector.load %arg5[%c0_22, %c96] : memref<4x358xf32, #tpu.memory_space<vmem>>, vector<4x256xf32>
    %55 = vector.broadcast %53 : vector<4x1xf32> to vector<4x256xf32>
    %56 = arith.mulf %55, %54 : vector<4x256xf32>
    %57 = arith.addf %47, %56 : vector<4x256xf32>
    %58 = arith.addf %57, %52 : vector<4x256xf32>
    %59 = arith.mulf %20, %58 : vector<4x256xf32>
    %60 = arith.addf %12, %59 : vector<4x256xf32>
    %c2_i32 = arith.constant 2 : i32
    %61 = vector.broadcast %c2_i32 : i32 to vector<4x256xi32>
    %62 = arith.cmpi sge, %10, %61 : vector<4x256xi32>
    %c18_i32 = arith.constant 18 : i32
    %63 = vector.broadcast %c18_i32 : i32 to vector<4x256xi32>
    %64 = arith.cmpi slt, %10, %63 : vector<4x256xi32>
    %65 = arith.andi %62, %64 : vector<4x256xi1>
    %66 = arith.extui %65 : vector<4x256xi1> to vector<4x256xi32>
    %67 = arith.sitofp %66 : vector<4x256xi32> to vector<4x256xf32>
    %cst_23 = arith.constant 0.000000e+00 : f32
    %68 = vector.broadcast %cst_23 : f32 to vector<4x256xf32>
    %cst_24 = arith.constant 0.000000e+00 : f32
    %69 = vector.broadcast %cst_24 : f32 to vector<4x256xf32>
    %70 = vector.extract_strided_slice %11 {offsets = [0, 1], sizes = [4, 1], strides = [1, 1]} : vector<4x49xf32> to vector<4x1xf32>
    %c0_25 = arith.constant 0 : index
    %c1 = arith.constant 1 : index
    %71 = vector.load %arg5[%c0_25, %c1] : memref<4x358xf32, #tpu.memory_space<vmem>>, vector<4x256xf32>
    %72 = vector.broadcast %70 : vector<4x1xf32> to vector<4x256xf32>
    %73 = arith.mulf %72, %71 : vector<4x256xf32>
    %74 = arith.addf %68, %73 : vector<4x256xf32>
    %75 = vector.extract_strided_slice %11 {offsets = [0, 8], sizes = [4, 1], strides = [1, 1]} : vector<4x49xf32> to vector<4x1xf32>
    %c0_26 = arith.constant 0 : index
    %c17 = arith.constant 17 : index
    %76 = vector.load %arg5[%c0_26, %c17] : memref<4x358xf32, #tpu.memory_space<vmem>>, vector<4x256xf32>
    %77 = vector.broadcast %75 : vector<4x1xf32> to vector<4x256xf32>
    %78 = arith.mulf %77, %76 : vector<4x256xf32>
    %79 = arith.addf %69, %78 : vector<4x256xf32>
    %80 = vector.extract_strided_slice %11 {offsets = [0, 15], sizes = [4, 1], strides = [1, 1]} : vector<4x49xf32> to vector<4x1xf32>
    %c0_27 = arith.constant 0 : index
    %c33 = arith.constant 33 : index
    %81 = vector.load %arg5[%c0_27, %c33] : memref<4x358xf32, #tpu.memory_space<vmem>>, vector<4x256xf32>
    %82 = vector.broadcast %80 : vector<4x1xf32> to vector<4x256xf32>
    %83 = arith.mulf %82, %81 : vector<4x256xf32>
    %84 = arith.addf %74, %83 : vector<4x256xf32>
    %85 = vector.extract_strided_slice %11 {offsets = [0, 22], sizes = [4, 1], strides = [1, 1]} : vector<4x49xf32> to vector<4x1xf32>
    %c0_28 = arith.constant 0 : index
    %c49 = arith.constant 49 : index
    %86 = vector.load %arg5[%c0_28, %c49] : memref<4x358xf32, #tpu.memory_space<vmem>>, vector<4x256xf32>
    %87 = vector.broadcast %85 : vector<4x1xf32> to vector<4x256xf32>
    %88 = arith.mulf %87, %86 : vector<4x256xf32>
    %89 = arith.addf %79, %88 : vector<4x256xf32>
    %90 = vector.extract_strided_slice %11 {offsets = [0, 29], sizes = [4, 1], strides = [1, 1]} : vector<4x49xf32> to vector<4x1xf32>
    %c0_29 = arith.constant 0 : index
    %c65 = arith.constant 65 : index
    %91 = vector.load %arg5[%c0_29, %c65] : memref<4x358xf32, #tpu.memory_space<vmem>>, vector<4x256xf32>
    %92 = vector.broadcast %90 : vector<4x1xf32> to vector<4x256xf32>
    %93 = arith.mulf %92, %91 : vector<4x256xf32>
    %94 = arith.addf %84, %93 : vector<4x256xf32>
    %95 = vector.extract_strided_slice %11 {offsets = [0, 36], sizes = [4, 1], strides = [1, 1]} : vector<4x49xf32> to vector<4x1xf32>
    %c0_30 = arith.constant 0 : index
    %c81 = arith.constant 81 : index
    %96 = vector.load %arg5[%c0_30, %c81] : memref<4x358xf32, #tpu.memory_space<vmem>>, vector<4x256xf32>
    %97 = vector.broadcast %95 : vector<4x1xf32> to vector<4x256xf32>
    %98 = arith.mulf %97, %96 : vector<4x256xf32>
    %99 = arith.addf %89, %98 : vector<4x256xf32>
    %100 = vector.extract_strided_slice %11 {offsets = [0, 43], sizes = [4, 1], strides = [1, 1]} : vector<4x49xf32> to vector<4x1xf32>
    %c0_31 = arith.constant 0 : index
    %c97 = arith.constant 97 : index
    %101 = vector.load %arg5[%c0_31, %c97] : memref<4x358xf32, #tpu.memory_space<vmem>>, vector<4x256xf32>
    %102 = vector.broadcast %100 : vector<4x1xf32> to vector<4x256xf32>
    %103 = arith.mulf %102, %101 : vector<4x256xf32>
    %104 = arith.addf %94, %103 : vector<4x256xf32>
    %105 = arith.addf %104, %99 : vector<4x256xf32>
    %106 = arith.mulf %67, %105 : vector<4x256xf32>
    %107 = arith.addf %13, %106 : vector<4x256xf32>
    %c1_i32 = arith.constant 1 : i32
    %108 = vector.broadcast %c1_i32 : i32 to vector<4x256xi32>
    %109 = arith.cmpi sge, %10, %108 : vector<4x256xi32>
    %c17_i32 = arith.constant 17 : i32
    %110 = vector.broadcast %c17_i32 : i32 to vector<4x256xi32>
    %111 = arith.cmpi slt, %10, %110 : vector<4x256xi32>
    %112 = arith.andi %109, %111 : vector<4x256xi1>
    %113 = arith.extui %112 : vector<4x256xi1> to vector<4x256xi32>
    %114 = arith.sitofp %113 : vector<4x256xi32> to vector<4x256xf32>
    %cst_32 = arith.constant 0.000000e+00 : f32
    %115 = vector.broadcast %cst_32 : f32 to vector<4x256xf32>
    %cst_33 = arith.constant 0.000000e+00 : f32
    %116 = vector.broadcast %cst_33 : f32 to vector<4x256xf32>
    %117 = vector.extract_strided_slice %11 {offsets = [0, 2], sizes = [4, 1], strides = [1, 1]} : vector<4x49xf32> to vector<4x1xf32>
    %c0_34 = arith.constant 0 : index
    %c2_35 = arith.constant 2 : index
    %118 = vector.load %arg5[%c0_34, %c2_35] : memref<4x358xf32, #tpu.memory_space<vmem>>, vector<4x256xf32>
    %119 = vector.broadcast %117 : vector<4x1xf32> to vector<4x256xf32>
    %120 = arith.mulf %119, %118 : vector<4x256xf32>
    %121 = arith.addf %115, %120 : vector<4x256xf32>
    %122 = vector.extract_strided_slice %11 {offsets = [0, 9], sizes = [4, 1], strides = [1, 1]} : vector<4x49xf32> to vector<4x1xf32>
    %c0_36 = arith.constant 0 : index
    %c18 = arith.constant 18 : index
    %123 = vector.load %arg5[%c0_36, %c18] : memref<4x358xf32, #tpu.memory_space<vmem>>, vector<4x256xf32>
    %124 = vector.broadcast %122 : vector<4x1xf32> to vector<4x256xf32>
    %125 = arith.mulf %124, %123 : vector<4x256xf32>
    %126 = arith.addf %116, %125 : vector<4x256xf32>
    %127 = vector.extract_strided_slice %11 {offsets = [0, 16], sizes = [4, 1], strides = [1, 1]} : vector<4x49xf32> to vector<4x1xf32>
    %c0_37 = arith.constant 0 : index
    %c34 = arith.constant 34 : index
    %128 = vector.load %arg5[%c0_37, %c34] : memref<4x358xf32, #tpu.memory_space<vmem>>, vector<4x256xf32>
    %129 = vector.broadcast %127 : vector<4x1xf32> to vector<4x256xf32>
    %130 = arith.mulf %129, %128 : vector<4x256xf32>
    %131 = arith.addf %121, %130 : vector<4x256xf32>
    %132 = vector.extract_strided_slice %11 {offsets = [0, 23], sizes = [4, 1], strides = [1, 1]} : vector<4x49xf32> to vector<4x1xf32>
    %c0_38 = arith.constant 0 : index
    %c50 = arith.constant 50 : index
    %133 = vector.load %arg5[%c0_38, %c50] : memref<4x358xf32, #tpu.memory_space<vmem>>, vector<4x256xf32>
    %134 = vector.broadcast %132 : vector<4x1xf32> to vector<4x256xf32>
    %135 = arith.mulf %134, %133 : vector<4x256xf32>
    %136 = arith.addf %126, %135 : vector<4x256xf32>
    %137 = vector.extract_strided_slice %11 {offsets = [0, 30], sizes = [4, 1], strides = [1, 1]} : vector<4x49xf32> to vector<4x1xf32>
    %c0_39 = arith.constant 0 : index
    %c66 = arith.constant 66 : index
    %138 = vector.load %arg5[%c0_39, %c66] : memref<4x358xf32, #tpu.memory_space<vmem>>, vector<4x256xf32>
    %139 = vector.broadcast %137 : vector<4x1xf32> to vector<4x256xf32>
    %140 = arith.mulf %139, %138 : vector<4x256xf32>
    %141 = arith.addf %131, %140 : vector<4x256xf32>
    %142 = vector.extract_strided_slice %11 {offsets = [0, 37], sizes = [4, 1], strides = [1, 1]} : vector<4x49xf32> to vector<4x1xf32>
    %c0_40 = arith.constant 0 : index
    %c82 = arith.constant 82 : index
    %143 = vector.load %arg5[%c0_40, %c82] : memref<4x358xf32, #tpu.memory_space<vmem>>, vector<4x256xf32>
    %144 = vector.broadcast %142 : vector<4x1xf32> to vector<4x256xf32>
    %145 = arith.mulf %144, %143 : vector<4x256xf32>
    %146 = arith.addf %136, %145 : vector<4x256xf32>
    %147 = vector.extract_strided_slice %11 {offsets = [0, 44], sizes = [4, 1], strides = [1, 1]} : vector<4x49xf32> to vector<4x1xf32>
    %c0_41 = arith.constant 0 : index
    %c98 = arith.constant 98 : index
    %148 = vector.load %arg5[%c0_41, %c98] : memref<4x358xf32, #tpu.memory_space<vmem>>, vector<4x256xf32>
    %149 = vector.broadcast %147 : vector<4x1xf32> to vector<4x256xf32>
    %150 = arith.mulf %149, %148 : vector<4x256xf32>
    %151 = arith.addf %141, %150 : vector<4x256xf32>
    %152 = arith.addf %151, %146 : vector<4x256xf32>
    %153 = arith.mulf %114, %152 : vector<4x256xf32>
    %154 = arith.addf %60, %153 : vector<4x256xf32>
    %c0_i32 = arith.constant 0 : i32
    %155 = vector.broadcast %c0_i32 : i32 to vector<4x256xi32>
    %156 = arith.cmpi sge, %10, %155 : vector<4x256xi32>
    %c16_i32 = arith.constant 16 : i32
    %157 = vector.broadcast %c16_i32 : i32 to vector<4x256xi32>
    %158 = arith.cmpi slt, %10, %157 : vector<4x256xi32>
    %159 = arith.andi %156, %158 : vector<4x256xi1>
    %160 = arith.extui %159 : vector<4x256xi1> to vector<4x256xi32>
    %161 = arith.sitofp %160 : vector<4x256xi32> to vector<4x256xf32>
    %cst_42 = arith.constant 0.000000e+00 : f32
    %162 = vector.broadcast %cst_42 : f32 to vector<4x256xf32>
    %cst_43 = arith.constant 0.000000e+00 : f32
    %163 = vector.broadcast %cst_43 : f32 to vector<4x256xf32>
    %164 = vector.extract_strided_slice %11 {offsets = [0, 3], sizes = [4, 1], strides = [1, 1]} : vector<4x49xf32> to vector<4x1xf32>
    %c0_44 = arith.constant 0 : index
    %c3 = arith.constant 3 : index
    %165 = vector.load %arg5[%c0_44, %c3] : memref<4x358xf32, #tpu.memory_space<vmem>>, vector<4x256xf32>
    %166 = vector.broadcast %164 : vector<4x1xf32> to vector<4x256xf32>
    %167 = arith.mulf %166, %165 : vector<4x256xf32>
    %168 = arith.addf %162, %167 : vector<4x256xf32>
    %169 = vector.extract_strided_slice %11 {offsets = [0, 10], sizes = [4, 1], strides = [1, 1]} : vector<4x49xf32> to vector<4x1xf32>
    %c0_45 = arith.constant 0 : index
    %c19 = arith.constant 19 : index
    %170 = vector.load %arg5[%c0_45, %c19] : memref<4x358xf32, #tpu.memory_space<vmem>>, vector<4x256xf32>
    %171 = vector.broadcast %169 : vector<4x1xf32> to vector<4x256xf32>
    %172 = arith.mulf %171, %170 : vector<4x256xf32>
    %173 = arith.addf %163, %172 : vector<4x256xf32>
    %174 = vector.extract_strided_slice %11 {offsets = [0, 17], sizes = [4, 1], strides = [1, 1]} : vector<4x49xf32> to vector<4x1xf32>
    %c0_46 = arith.constant 0 : index
    %c35 = arith.constant 35 : index
    %175 = vector.load %arg5[%c0_46, %c35] : memref<4x358xf32, #tpu.memory_space<vmem>>, vector<4x256xf32>
    %176 = vector.broadcast %174 : vector<4x1xf32> to vector<4x256xf32>
    %177 = arith.mulf %176, %175 : vector<4x256xf32>
    %178 = arith.addf %168, %177 : vector<4x256xf32>
    %179 = vector.extract_strided_slice %11 {offsets = [0, 24], sizes = [4, 1], strides = [1, 1]} : vector<4x49xf32> to vector<4x1xf32>
    %c0_47 = arith.constant 0 : index
    %c51_48 = arith.constant 51 : index
    %180 = vector.load %arg5[%c0_47, %c51_48] : memref<4x358xf32, #tpu.memory_space<vmem>>, vector<4x256xf32>
    %181 = vector.broadcast %179 : vector<4x1xf32> to vector<4x256xf32>
    %182 = arith.mulf %181, %180 : vector<4x256xf32>
    %183 = arith.addf %173, %182 : vector<4x256xf32>
    %184 = vector.extract_strided_slice %11 {offsets = [0, 31], sizes = [4, 1], strides = [1, 1]} : vector<4x49xf32> to vector<4x1xf32>
    %c0_49 = arith.constant 0 : index
    %c67 = arith.constant 67 : index
    %185 = vector.load %arg5[%c0_49, %c67] : memref<4x358xf32, #tpu.memory_space<vmem>>, vector<4x256xf32>
    %186 = vector.broadcast %184 : vector<4x1xf32> to vector<4x256xf32>
    %187 = arith.mulf %186, %185 : vector<4x256xf32>
    %188 = arith.addf %178, %187 : vector<4x256xf32>
    %189 = vector.extract_strided_slice %11 {offsets = [0, 38], sizes = [4, 1], strides = [1, 1]} : vector<4x49xf32> to vector<4x1xf32>
    %c0_50 = arith.constant 0 : index
    %c83 = arith.constant 83 : index
    %190 = vector.load %arg5[%c0_50, %c83] : memref<4x358xf32, #tpu.memory_space<vmem>>, vector<4x256xf32>
    %191 = vector.broadcast %189 : vector<4x1xf32> to vector<4x256xf32>
    %192 = arith.mulf %191, %190 : vector<4x256xf32>
    %193 = arith.addf %183, %192 : vector<4x256xf32>
    %194 = vector.extract_strided_slice %11 {offsets = [0, 45], sizes = [4, 1], strides = [1, 1]} : vector<4x49xf32> to vector<4x1xf32>
    %c0_51 = arith.constant 0 : index
    %c99 = arith.constant 99 : index
    %195 = vector.load %arg5[%c0_51, %c99] : memref<4x358xf32, #tpu.memory_space<vmem>>, vector<4x256xf32>
    %196 = vector.broadcast %194 : vector<4x1xf32> to vector<4x256xf32>
    %197 = arith.mulf %196, %195 : vector<4x256xf32>
    %198 = arith.addf %188, %197 : vector<4x256xf32>
    %199 = arith.addf %198, %193 : vector<4x256xf32>
    %200 = arith.mulf %161, %199 : vector<4x256xf32>
    %201 = arith.addf %107, %200 : vector<4x256xf32>
    %c-1_i32 = arith.constant -1 : i32
    %202 = vector.broadcast %c-1_i32 : i32 to vector<4x256xi32>
    %203 = arith.cmpi sge, %10, %202 : vector<4x256xi32>
    %c15_i32_52 = arith.constant 15 : i32
    %204 = vector.broadcast %c15_i32_52 : i32 to vector<4x256xi32>
    %205 = arith.cmpi slt, %10, %204 : vector<4x256xi32>
    %206 = arith.andi %203, %205 : vector<4x256xi1>
    %207 = arith.extui %206 : vector<4x256xi1> to vector<4x256xi32>
    %208 = arith.sitofp %207 : vector<4x256xi32> to vector<4x256xf32>
    %cst_53 = arith.constant 0.000000e+00 : f32
    %209 = vector.broadcast %cst_53 : f32 to vector<4x256xf32>
    %cst_54 = arith.constant 0.000000e+00 : f32
    %210 = vector.broadcast %cst_54 : f32 to vector<4x256xf32>
    %211 = vector.extract_strided_slice %11 {offsets = [0, 4], sizes = [4, 1], strides = [1, 1]} : vector<4x49xf32> to vector<4x1xf32>
    %c0_55 = arith.constant 0 : index
    %c4 = arith.constant 4 : index
    %212 = vector.load %arg5[%c0_55, %c4] : memref<4x358xf32, #tpu.memory_space<vmem>>, vector<4x256xf32>
    %213 = vector.broadcast %211 : vector<4x1xf32> to vector<4x256xf32>
    %214 = arith.mulf %213, %212 : vector<4x256xf32>
    %215 = arith.addf %209, %214 : vector<4x256xf32>
    %216 = vector.extract_strided_slice %11 {offsets = [0, 11], sizes = [4, 1], strides = [1, 1]} : vector<4x49xf32> to vector<4x1xf32>
    %c0_56 = arith.constant 0 : index
    %c20 = arith.constant 20 : index
    %217 = vector.load %arg5[%c0_56, %c20] : memref<4x358xf32, #tpu.memory_space<vmem>>, vector<4x256xf32>
    %218 = vector.broadcast %216 : vector<4x1xf32> to vector<4x256xf32>
    %219 = arith.mulf %218, %217 : vector<4x256xf32>
    %220 = arith.addf %210, %219 : vector<4x256xf32>
    %221 = vector.extract_strided_slice %11 {offsets = [0, 18], sizes = [4, 1], strides = [1, 1]} : vector<4x49xf32> to vector<4x1xf32>
    %c0_57 = arith.constant 0 : index
    %c36 = arith.constant 36 : index
    %222 = vector.load %arg5[%c0_57, %c36] : memref<4x358xf32, #tpu.memory_space<vmem>>, vector<4x256xf32>
    %223 = vector.broadcast %221 : vector<4x1xf32> to vector<4x256xf32>
    %224 = arith.mulf %223, %222 : vector<4x256xf32>
    %225 = arith.addf %215, %224 : vector<4x256xf32>
    %226 = vector.extract_strided_slice %11 {offsets = [0, 25], sizes = [4, 1], strides = [1, 1]} : vector<4x49xf32> to vector<4x1xf32>
    %c0_58 = arith.constant 0 : index
    %c52 = arith.constant 52 : index
    %227 = vector.load %arg5[%c0_58, %c52] : memref<4x358xf32, #tpu.memory_space<vmem>>, vector<4x256xf32>
    %228 = vector.broadcast %226 : vector<4x1xf32> to vector<4x256xf32>
    %229 = arith.mulf %228, %227 : vector<4x256xf32>
    %230 = arith.addf %220, %229 : vector<4x256xf32>
    %231 = vector.extract_strided_slice %11 {offsets = [0, 32], sizes = [4, 1], strides = [1, 1]} : vector<4x49xf32> to vector<4x1xf32>
    %c0_59 = arith.constant 0 : index
    %c68 = arith.constant 68 : index
    %232 = vector.load %arg5[%c0_59, %c68] : memref<4x358xf32, #tpu.memory_space<vmem>>, vector<4x256xf32>
    %233 = vector.broadcast %231 : vector<4x1xf32> to vector<4x256xf32>
    %234 = arith.mulf %233, %232 : vector<4x256xf32>
    %235 = arith.addf %225, %234 : vector<4x256xf32>
    %236 = vector.extract_strided_slice %11 {offsets = [0, 39], sizes = [4, 1], strides = [1, 1]} : vector<4x49xf32> to vector<4x1xf32>
    %c0_60 = arith.constant 0 : index
    %c84 = arith.constant 84 : index
    %237 = vector.load %arg5[%c0_60, %c84] : memref<4x358xf32, #tpu.memory_space<vmem>>, vector<4x256xf32>
    %238 = vector.broadcast %236 : vector<4x1xf32> to vector<4x256xf32>
    %239 = arith.mulf %238, %237 : vector<4x256xf32>
    %240 = arith.addf %230, %239 : vector<4x256xf32>
    %241 = vector.extract_strided_slice %11 {offsets = [0, 46], sizes = [4, 1], strides = [1, 1]} : vector<4x49xf32> to vector<4x1xf32>
    %c0_61 = arith.constant 0 : index
    %c100 = arith.constant 100 : index
    %242 = vector.load %arg5[%c0_61, %c100] : memref<4x358xf32, #tpu.memory_space<vmem>>, vector<4x256xf32>
    %243 = vector.broadcast %241 : vector<4x1xf32> to vector<4x256xf32>
    %244 = arith.mulf %243, %242 : vector<4x256xf32>
    %245 = arith.addf %235, %244 : vector<4x256xf32>
    %246 = arith.addf %245, %240 : vector<4x256xf32>
    %247 = arith.mulf %208, %246 : vector<4x256xf32>
    %248 = arith.addf %154, %247 : vector<4x256xf32>
    %c-2_i32 = arith.constant -2 : i32
    %249 = vector.broadcast %c-2_i32 : i32 to vector<4x256xi32>
    %250 = arith.cmpi sge, %10, %249 : vector<4x256xi32>
    %c14_i32 = arith.constant 14 : i32
    %251 = vector.broadcast %c14_i32 : i32 to vector<4x256xi32>
    %252 = arith.cmpi slt, %10, %251 : vector<4x256xi32>
    %253 = arith.andi %250, %252 : vector<4x256xi1>
    %254 = arith.extui %253 : vector<4x256xi1> to vector<4x256xi32>
    %255 = arith.sitofp %254 : vector<4x256xi32> to vector<4x256xf32>
    %cst_62 = arith.constant 0.000000e+00 : f32
    %256 = vector.broadcast %cst_62 : f32 to vector<4x256xf32>
    %cst_63 = arith.constant 0.000000e+00 : f32
    %257 = vector.broadcast %cst_63 : f32 to vector<4x256xf32>
    %258 = vector.extract_strided_slice %11 {offsets = [0, 5], sizes = [4, 1], strides = [1, 1]} : vector<4x49xf32> to vector<4x1xf32>
    %c0_64 = arith.constant 0 : index
    %c5 = arith.constant 5 : index
    %259 = vector.load %arg5[%c0_64, %c5] : memref<4x358xf32, #tpu.memory_space<vmem>>, vector<4x256xf32>
    %260 = vector.broadcast %258 : vector<4x1xf32> to vector<4x256xf32>
    %261 = arith.mulf %260, %259 : vector<4x256xf32>
    %262 = arith.addf %256, %261 : vector<4x256xf32>
    %263 = vector.extract_strided_slice %11 {offsets = [0, 12], sizes = [4, 1], strides = [1, 1]} : vector<4x49xf32> to vector<4x1xf32>
    %c0_65 = arith.constant 0 : index
    %c21 = arith.constant 21 : index
    %264 = vector.load %arg5[%c0_65, %c21] : memref<4x358xf32, #tpu.memory_space<vmem>>, vector<4x256xf32>
    %265 = vector.broadcast %263 : vector<4x1xf32> to vector<4x256xf32>
    %266 = arith.mulf %265, %264 : vector<4x256xf32>
    %267 = arith.addf %257, %266 : vector<4x256xf32>
    %268 = vector.extract_strided_slice %11 {offsets = [0, 19], sizes = [4, 1], strides = [1, 1]} : vector<4x49xf32> to vector<4x1xf32>
    %c0_66 = arith.constant 0 : index
    %c37 = arith.constant 37 : index
    %269 = vector.load %arg5[%c0_66, %c37] : memref<4x358xf32, #tpu.memory_space<vmem>>, vector<4x256xf32>
    %270 = vector.broadcast %268 : vector<4x1xf32> to vector<4x256xf32>
    %271 = arith.mulf %270, %269 : vector<4x256xf32>
    %272 = arith.addf %262, %271 : vector<4x256xf32>
    %273 = vector.extract_strided_slice %11 {offsets = [0, 26], sizes = [4, 1], strides = [1, 1]} : vector<4x49xf32> to vector<4x1xf32>
    %c0_67 = arith.constant 0 : index
    %c53 = arith.constant 53 : index
    %274 = vector.load %arg5[%c0_67, %c53] : memref<4x358xf32, #tpu.memory_space<vmem>>, vector<4x256xf32>
    %275 = vector.broadcast %273 : vector<4x1xf32> to vector<4x256xf32>
    %276 = arith.mulf %275, %274 : vector<4x256xf32>
    %277 = arith.addf %267, %276 : vector<4x256xf32>
    %278 = vector.extract_strided_slice %11 {offsets = [0, 33], sizes = [4, 1], strides = [1, 1]} : vector<4x49xf32> to vector<4x1xf32>
    %c0_68 = arith.constant 0 : index
    %c69 = arith.constant 69 : index
    %279 = vector.load %arg5[%c0_68, %c69] : memref<4x358xf32, #tpu.memory_space<vmem>>, vector<4x256xf32>
    %280 = vector.broadcast %278 : vector<4x1xf32> to vector<4x256xf32>
    %281 = arith.mulf %280, %279 : vector<4x256xf32>
    %282 = arith.addf %272, %281 : vector<4x256xf32>
    %283 = vector.extract_strided_slice %11 {offsets = [0, 40], sizes = [4, 1], strides = [1, 1]} : vector<4x49xf32> to vector<4x1xf32>
    %c0_69 = arith.constant 0 : index
    %c85 = arith.constant 85 : index
    %284 = vector.load %arg5[%c0_69, %c85] : memref<4x358xf32, #tpu.memory_space<vmem>>, vector<4x256xf32>
    %285 = vector.broadcast %283 : vector<4x1xf32> to vector<4x256xf32>
    %286 = arith.mulf %285, %284 : vector<4x256xf32>
    %287 = arith.addf %277, %286 : vector<4x256xf32>
    %288 = vector.extract_strided_slice %11 {offsets = [0, 47], sizes = [4, 1], strides = [1, 1]} : vector<4x49xf32> to vector<4x1xf32>
    %c0_70 = arith.constant 0 : index
    %c101 = arith.constant 101 : index
    %289 = vector.load %arg5[%c0_70, %c101] : memref<4x358xf32, #tpu.memory_space<vmem>>, vector<4x256xf32>
    %290 = vector.broadcast %288 : vector<4x1xf32> to vector<4x256xf32>
    %291 = arith.mulf %290, %289 : vector<4x256xf32>
    %292 = arith.addf %282, %291 : vector<4x256xf32>
    %293 = arith.addf %292, %287 : vector<4x256xf32>
    %294 = arith.mulf %255, %293 : vector<4x256xf32>
    %295 = arith.addf %201, %294 : vector<4x256xf32>
    %c-3_i32 = arith.constant -3 : i32
    %296 = vector.broadcast %c-3_i32 : i32 to vector<4x256xi32>
    %297 = arith.cmpi sge, %10, %296 : vector<4x256xi32>
    %c13_i32 = arith.constant 13 : i32
    %298 = vector.broadcast %c13_i32 : i32 to vector<4x256xi32>
    %299 = arith.cmpi slt, %10, %298 : vector<4x256xi32>
    %300 = arith.andi %297, %299 : vector<4x256xi1>
    %301 = arith.extui %300 : vector<4x256xi1> to vector<4x256xi32>
    %302 = arith.sitofp %301 : vector<4x256xi32> to vector<4x256xf32>
    %cst_71 = arith.constant 0.000000e+00 : f32
    %303 = vector.broadcast %cst_71 : f32 to vector<4x256xf32>
    %cst_72 = arith.constant 0.000000e+00 : f32
    %304 = vector.broadcast %cst_72 : f32 to vector<4x256xf32>
    %305 = vector.extract_strided_slice %11 {offsets = [0, 6], sizes = [4, 1], strides = [1, 1]} : vector<4x49xf32> to vector<4x1xf32>
    %c0_73 = arith.constant 0 : index
    %c6 = arith.constant 6 : index
    %306 = vector.load %arg5[%c0_73, %c6] : memref<4x358xf32, #tpu.memory_space<vmem>>, vector<4x256xf32>
    %307 = vector.broadcast %305 : vector<4x1xf32> to vector<4x256xf32>
    %308 = arith.mulf %307, %306 : vector<4x256xf32>
    %309 = arith.addf %303, %308 : vector<4x256xf32>
    %310 = vector.extract_strided_slice %11 {offsets = [0, 13], sizes = [4, 1], strides = [1, 1]} : vector<4x49xf32> to vector<4x1xf32>
    %c0_74 = arith.constant 0 : index
    %c22 = arith.constant 22 : index
    %311 = vector.load %arg5[%c0_74, %c22] : memref<4x358xf32, #tpu.memory_space<vmem>>, vector<4x256xf32>
    %312 = vector.broadcast %310 : vector<4x1xf32> to vector<4x256xf32>
    %313 = arith.mulf %312, %311 : vector<4x256xf32>
    %314 = arith.addf %304, %313 : vector<4x256xf32>
    %315 = vector.extract_strided_slice %11 {offsets = [0, 20], sizes = [4, 1], strides = [1, 1]} : vector<4x49xf32> to vector<4x1xf32>
    %c0_75 = arith.constant 0 : index
    %c38 = arith.constant 38 : index
    %316 = vector.load %arg5[%c0_75, %c38] : memref<4x358xf32, #tpu.memory_space<vmem>>, vector<4x256xf32>
    %317 = vector.broadcast %315 : vector<4x1xf32> to vector<4x256xf32>
    %318 = arith.mulf %317, %316 : vector<4x256xf32>
    %319 = arith.addf %309, %318 : vector<4x256xf32>
    %320 = vector.extract_strided_slice %11 {offsets = [0, 27], sizes = [4, 1], strides = [1, 1]} : vector<4x49xf32> to vector<4x1xf32>
    %c0_76 = arith.constant 0 : index
    %c54 = arith.constant 54 : index
    %321 = vector.load %arg5[%c0_76, %c54] : memref<4x358xf32, #tpu.memory_space<vmem>>, vector<4x256xf32>
    %322 = vector.broadcast %320 : vector<4x1xf32> to vector<4x256xf32>
    %323 = arith.mulf %322, %321 : vector<4x256xf32>
    %324 = arith.addf %314, %323 : vector<4x256xf32>
    %325 = vector.extract_strided_slice %11 {offsets = [0, 34], sizes = [4, 1], strides = [1, 1]} : vector<4x49xf32> to vector<4x1xf32>
    %c0_77 = arith.constant 0 : index
    %c70 = arith.constant 70 : index
    %326 = vector.load %arg5[%c0_77, %c70] : memref<4x358xf32, #tpu.memory_space<vmem>>, vector<4x256xf32>
    %327 = vector.broadcast %325 : vector<4x1xf32> to vector<4x256xf32>
    %328 = arith.mulf %327, %326 : vector<4x256xf32>
    %329 = arith.addf %319, %328 : vector<4x256xf32>
    %330 = vector.extract_strided_slice %11 {offsets = [0, 41], sizes = [4, 1], strides = [1, 1]} : vector<4x49xf32> to vector<4x1xf32>
    %c0_78 = arith.constant 0 : index
    %c86 = arith.constant 86 : index
    %331 = vector.load %arg5[%c0_78, %c86] : memref<4x358xf32, #tpu.memory_space<vmem>>, vector<4x256xf32>
    %332 = vector.broadcast %330 : vector<4x1xf32> to vector<4x256xf32>
    %333 = arith.mulf %332, %331 : vector<4x256xf32>
    %334 = arith.addf %324, %333 : vector<4x256xf32>
    %335 = vector.extract_strided_slice %11 {offsets = [0, 48], sizes = [4, 1], strides = [1, 1]} : vector<4x49xf32> to vector<4x1xf32>
    %c0_79 = arith.constant 0 : index
    %c102 = arith.constant 102 : index
    %336 = vector.load %arg5[%c0_79, %c102] : memref<4x358xf32, #tpu.memory_space<vmem>>, vector<4x256xf32>
    %337 = vector.broadcast %335 : vector<4x1xf32> to vector<4x256xf32>
    %338 = arith.mulf %337, %336 : vector<4x256xf32>
    %339 = arith.addf %329, %338 : vector<4x256xf32>
    %340 = arith.addf %339, %334 : vector<4x256xf32>
    %341 = arith.mulf %302, %340 : vector<4x256xf32>
    %342 = arith.addf %248, %341 : vector<4x256xf32>
    %343 = arith.addf %342, %295 : vector<4x256xf32>
    %344 = vector.extract_strided_slice %343 {offsets = [0, 0], sizes = [2, 256], strides = [1, 1]} : vector<4x256xf32> to vector<2x256xf32>
    %345 = vector.extract_strided_slice %343 {offsets = [2, 0], sizes = [2, 256], strides = [1, 1]} : vector<4x256xf32> to vector<2x256xf32>
    %346 = arith.addf %344, %345 : vector<2x256xf32>
    %c0_80 = arith.constant 0 : index
    %347 = memref.load %arg3[%c0_80] : memref<2xf32, #tpu.memory_space<smem>>
    %348 = vector.broadcast %347 : f32 to vector<2x256xf32>
    %349 = arith.mulf %348, %346 : vector<2x256xf32>
    %c1_81 = arith.constant 1 : index
    %350 = memref.load %arg3[%c1_81] : memref<2xf32, #tpu.memory_space<smem>>
    %351 = vector.broadcast %350 : f32 to vector<2x256xf32>
    %352 = arith.addf %349, %351 : vector<2x256xf32>
    %353 = arith.negf %352 : vector<2x256xf32>
    %354 = math.exp %353 : vector<2x256xf32>
    %cst_82 = arith.constant 1.000000e+00 : f32
    %355 = vector.broadcast %cst_82 : f32 to vector<2x256xf32>
    %356 = arith.addf %355, %354 : vector<2x256xf32>
    %357 = arith.divf %355, %356 : vector<2x256xf32>
    %358 = vector.shape_cast %357 : vector<2x256xf32> to vector<2x1x256xf32>
    %359 = vector.broadcast %358 : vector<2x1x256xf32> to vector<2x4x256xf32>
    %360 = arith.mulf %0, %359 : vector<2x4x256xf32>
    %c0_83 = arith.constant 0 : index
    %c0_84 = arith.constant 0 : index
    %c0_85 = arith.constant 0 : index
    %361 = vector.load %arg4[%c0_83, %c0_84, %c0_85] : memref<2x4x256xf32, #tpu.memory_space<vmem>>, vector<2x4x256xf32>
    tpu.vector_store %arg4[%c0_83, %c0_84, %c0_85], %360 {strides = array<i32>} : memref<2x4x256xf32, #tpu.memory_space<vmem>>, vector<2x4x256xf32>,
    return
  }
  func.func @transform_0(%arg0: i32) -> (i32, i32, i32) {
    %c0_i32 = arith.constant 0 : i32
    %c0_i32_0 = arith.constant 0 : i32
    %c0_i32_1 = arith.constant 0 : i32
    return %arg0, %c0_i32, %c0_i32_0 : i32, i32, i32
  }
  func.func @transform_1(%arg0: i32) -> (i32, i32) {
    %c0_i32 = arith.constant 0 : i32
    %c0_i32_0 = arith.constant 0 : i32
    %c0_i32_1 = arith.constant 0 : i32
    return %c0_i32, %c0_i32_0 : i32, i32
  }
  func.func @transform_2(%arg0: i32) -> i32 {
    %c0_i32 = arith.constant 0 : i32
    %c0_i32_0 = arith.constant 0 : i32
    return %c0_i32 : i32
  }
  func.func @transform_3(%arg0: i32) -> (i32, i32, i32) {
    %c0_i32 = arith.constant 0 : i32
    %c0_i32_0 = arith.constant 0 : i32
    %c0_i32_1 = arith.constant 0 : i32
    return %arg0, %c0_i32, %c0_i32_0 : i32, i32, i32
  }
}

</mosaic_0001>

<llo_original>
// kernel: spatial_attn.1
$region0: #{spatial_attn.1}
  #allocation0 [shape = 'u32[]', space=smem, size = 0x4, offset = 0x4, fixed_abs, tag = 'smem constant byte address 0x4 - core index']
  #allocation1 [shape = 'u32[144,128]{1,0:T(1,128)}', space=vmem, size = 0x12000, scoped, tag = 'internal scratch']
  #allocation2 [shape = 'f32[4,358]{1,0:T(4,128)}', space=vmem, size = 0x1800, scoped, tag = 'scratch operand']
  %s0 = inlined_call_operand.vmem [shape: f32[2,4,256], index: 0, kind: input, shape index: {}]
  %s1 = inlined_call_operand.vmem [shape: f32[4,49], index: 1, kind: input, shape index: {}]
  %s2 = inlined_call_operand.vmem [shape: f32[2], index: 2, kind: input, shape index: {}]
  %s3 = inlined_call_operand.vmem [shape: f32[2,4,256], index: 3, kind: output, shape index: {}]
  %s4 = sld [smem:[#allocation0]]
  $region26: #{spatial_attn.1} parent=0
    _
  %s6 = ssub.s32 1, %s4
  %s7 = scalar_select 0, %s6, %s4
  $region1: #{spatial_attn.1} parent=0
    #allocation3 [shape = 'u8[512]{0}', space=smem, size = 0x200, scoped, tag = 'input window, operand 2, single buffered']
    #allocation4 [shape = 's32[1]{0}', space=sflag, size = 0x4, scoped, tag = 'scoped memory for spatial_attn.1']
    %8 = vsyncpa [#allocation4], 0
    // Predicated region
    $region2: #{spatial_attn.1} parent=1 // pred_check
      _
    $region3: #{spatial_attn.1} parent=1 // pred_check_branch
      %10 = sbr.rel (0) target = $region5
    $region4: #{spatial_attn.1} parent=1 // pred_region
      _
    $region5: #{spatial_attn.1} parent=1 // pred_fallthru
      _
    // Predicated region
    $region6: #{spatial_attn.1} parent=1 // pred_check
      _
    $region7: #{spatial_attn.1} parent=1 // pred_check_branch
      %12 = sbr.rel (0) target = $region9
    $region8: #{spatial_attn.1} parent=1 // pred_region
      _
    $region9: #{spatial_attn.1} parent=1 // pred_fallthru
      _
    // Predicated region
    $region10: #{spatial_attn.1} parent=1 // pred_check
      _
    $region11: #{spatial_attn.1} parent=1 // pred_check_branch
      %14 = sbr.rel (0) target = $region13
    $region12: #{spatial_attn.1} parent=1 // pred_region
      %s16 = ssub.s32 16, 16
      %17 = vsyncadd [#allocation4], %s16
      %s19 = sshll.u32 %s2, 4
      %s20 = int_to_ptr.vmem [resolvable:$true] %s19
      %22 = dma.vmem_to_smem %s20, 16, [#allocation3], [#allocation4]
    $region13: #{spatial_attn.1} parent=1 // pred_fallthru
      _
    // Predicated region
    $region14: #{spatial_attn.1} parent=1 // pred_check
      _
    $region15: #{spatial_attn.1} parent=1 // pred_check_branch
      %24 = sbr.rel (0) target = $region17
    $region16: #{spatial_attn.1} parent=1 // pred_region
      %25 = dma.done [#allocation4], 16
    $region17: #{spatial_attn.1} parent=1 // pred_fallthru
      _
    %26 = sfence
    %v27 = vld [vmem:[%s0] sm:$0xff]
    %v28 = vld [vmem:[%s0 + $0x8] sm:$0xff]
    %v31 = vcombine.high %v27, %v27
    %v32 = vcombine.high %v28, %v28
    %vm35 = vcmask 1043456
    %v36 = vsel %vm35, %v27, -inf
    %v37 = vrot.slane %v36, 4
    %v38 = vmax.f32 %v36, %v37
    %v39 = vrot.slane %v38, 2
    %v40 = vmax.f32 %v38, %v39
    %v41 = vrot.slane %v40, 1
    %v42 = vmax.f32 %v40, %v41
    %v43 = vsel %vm35, %v31, -inf
    %v44 = vrot.slane %v43, 4
    %v45 = vmax.f32 %v43, %v44
    %v46 = vrot.slane %v45, 2
    %v47 = vmax.f32 %v45, %v46
    %v48 = vrot.slane %v47, 1
    %v49 = vmax.f32 %v47, %v48
    %v50 = vsel %vm35, %v28, -inf
    %v51 = vrot.slane %v50, 4
    %v52 = vmax.f32 %v50, %v51
    %v53 = vrot.slane %v52, 2
    %v54 = vmax.f32 %v52, %v53
    %v55 = vrot.slane %v54, 1
    %v56 = vmax.f32 %v54, %v55
    %v57 = vsel %vm35, %v32, -inf
    %v58 = vrot.slane %v57, 4
    %v59 = vmax.f32 %v57, %v58
    %v60 = vrot.slane %v59, 2
    %v61 = vmax.f32 %v59, %v60
    %v62 = vrot.slane %v61, 1
    %v63 = vmax.f32 %v61, %v62
    %v64 = vsel %vm35, %v27, 0.0
    %v65 = vrot.slane %v64, 4
    %v66 = vadd.f32 %v64, %v65
    %v67 = vrot.slane %v66, 2
    %v68 = vadd.f32 %v66, %v67
    %v69 = vrot.slane %v68, 1
    %v70 = vadd.f32 %v68, %v69
    %v71 = vsel %vm35, %v31, 0.0
    %v72 = vrot.slane %v71, 4
    %v73 = vadd.f32 %v71, %v72
    %v74 = vrot.slane %v73, 2
    %v75 = vadd.f32 %v73, %v74
    %v76 = vrot.slane %v75, 1
    %v77 = vadd.f32 %v75, %v76
    %v78 = vsel %vm35, %v28, 0.0
    %v79 = vrot.slane %v78, 4
    %v80 = vadd.f32 %v78, %v79
    %v81 = vrot.slane %v80, 2
    %v82 = vadd.f32 %v80, %v81
    %v83 = vrot.slane %v82, 1
    %v84 = vadd.f32 %v82, %v83
    %v85 = vsel %vm35, %v32, 0.0
    %v86 = vrot.slane %v85, 4
    %v87 = vadd.f32 %v85, %v86
    %v88 = vrot.slane %v87, 2
    %v89 = vadd.f32 %v87, %v88
    %v90 = vrot.slane %v89, 1
    %v91 = vadd.f32 %v89, %v90
    %vm92 = vcmask 412672
    %93 = vst.msk [vmem:[#allocation2] sm:$0xf] %vm92, 0.0
    %vm94 = vcmask 830872
    %95 = vst.msk [vmem:[#allocation2 + $0x8] sm:$0xf] %vm94, 0.0
    %v100 = vcombine.low %v42, %v49
    %v101 = vcombine.low %v56, %v63
    %v102 = vrot.slane %v101, 7
    %vm103 = vcmask 1041409
    %v104 = vsel %vm103, %v102, %v100
    %vm105 = vcmask 1045509
    %v106 = vsel %vm105, %v102, %v104
    %107 = vrot.lane.b32.xlu0 %v106, 51
    %v108 = vpop.permute.xlu0 %107
    %v109 = vrot.slane %v108, 4
    %vm110 = vcmask 416768
    %v111 = vsel %vm110, %v109, %v108
    %vm114 = vcmask 1041816
    %vm115 = vcmask 1045508
    %vm116 = vmor %vm115, %vm114
    %117 = vst.msk [vmem:[#allocation2] sm:$0x33] %vm116, %v111
    %vm118 = vcmask 410624
    %119 = vst.msk [vmem:[#allocation2 + $0x8] sm:$0x3] %vm118, %v109
    %v124 = vcombine.low %v70, %v77
    %v125 = vcombine.low %v84, %v91
    %v126 = vrot.slane %v124, 6
    %v127 = vrot.slane %v125, 5
    %vm128 = vcmask 1043459
    %v129 = vsel %vm128, %v127, %v126
    %vm130 = vcmask 1047559
    %v131 = vsel %vm130, %v127, %v129
    %132 = vrot.lane.b32.xlu0 %v131, 51
    %v133 = vpop.permute.xlu0 %132
    %v134 = vrot.slane %v133, 4
    %v135 = vsel %vm110, %v134, %v133
    %vm138 = vcmask 1043866
    %vm139 = vcmask 1047558
    %vm140 = vmor %vm139, %vm138
    %141 = vst.msk [vmem:[#allocation2] sm:$0xcc] %vm140, %v135
    %vm142 = vcmask 412674
    %143 = vst.msk [vmem:[#allocation2 + $0x8] sm:$0xc] %vm142, %v134
    %v144 = vlaneseq
    %v145 = vand.u32 %v144, 127
    %v146 = vadd.s32 %v145, 128
    %v147 = vand.u32 %v145, 15
    %v148 = vand.u32 %v146, 15
    %v149 = vld [vmem:[%s1] sm:$0xf]
    %vm150 = vcmp.ge.s32.totalorder %v147, 3
    %vm151 = vcmp.ge.s32.totalorder %v148, 3
    %vm152 = vcmp.lt.s32.totalorder %v147, 19
    %vm153 = vcmp.lt.s32.totalorder %v148, 19
    %vm154 = vmand %vm150, %vm152
    %vm155 = vmand %vm151, %vm153
    %v156 = vsel %vm154, 1, 0
    %v157 = vsel %vm155, 1, 0
    %v158 = vcvt.s32.f32 %v156
    %v159 = vcvt.s32.f32 %v157
    %v160 = vld [vmem:[#allocation2] sm:$0xff]
    %162 = vset.pattern.permute.xlu0 0
    %163 = vperm.xlu0 %162, %v149
    %v164 = vpop.permute.xlu0 %163
    %v167 = vcombine.high %v160, %v160
    %v169 = vmul.f32 %v164, %v160
    %v170 = vmul.f32 %v164, %v167
    %v171 = vadd.f32 %v169, 0.0
    %v172 = vadd.f32 %v170, 0.0
    %v173 = vld [vmem:[#allocation2] sm:$0xff]
    %v174 = vld [vmem:[#allocation2 + $0x8] sm:$0xf]
    %175 = vset.pattern.permute.xlu0 7
    %176 = vperm.xlu0 %175, %v149
    %v177 = vpop.permute.xlu0 %176
    %v181 = vcombine.high %v173, %v173
    %182 = vrot.lane.b32.xlu0 %v173, 112
    %v183 = vpop.permute.xlu0 %182
    %184 = vrot.lane.b32.xlu0 %v181, 112
    %v185 = vpop.permute.xlu0 %184
    %186 = vrot.lane.b32.xlu0 %v174, 112
    %v187 = vpop.permute.xlu0 %186
    %vm188 = vcmask 916480
    %v189 = vsel %vm188, %v183, %v185
    %v190 = vsel %vm188, %v185, %v187
    %v193 = vmul.f32 %v177, %v189
    %v194 = vmul.f32 %v177, %v190
    %v195 = vadd.f32 %v193, 0.0
    %v196 = vadd.f32 %v194, 0.0
    %v197 = vld [vmem:[#allocation2] sm:$0xff]
    %v198 = vld [vmem:[#allocation2 + $0x8] sm:$0xf]
    %199 = vset.pattern.permute.xlu0 14
    %200 = vperm.xlu0 %199, %v149
    %v201 = vpop.permute.xlu0 %200
    %v205 = vcombine.high %v197, %v197
    %206 = vrot.lane.b32.xlu0 %v197, 96
    %v207 = vpop.permute.xlu0 %206
    %208 = vrot.lane.b32.xlu0 %v205, 96
    %v209 = vpop.permute.xlu0 %208
    %210 = vrot.lane.b32.xlu0 %v198, 96
    %v211 = vpop.permute.xlu0 %210
    %vm212 = vcmask 785408
    %v213 = vsel %vm212, %v207, %v209
    %v214 = vsel %vm212, %v209, %v211
    %v217 = vmul.f32 %v201, %v213
    %v218 = vmul.f32 %v201, %v214
    %v219 = vadd.f32 %v171, %v217
    %v220 = vadd.f32 %v172, %v218
    %v221 = vld [vmem:[#allocation2] sm:$0xff]
    %v222 = vld [vmem:[#allocation2 + $0x8] sm:$0xf]
    %223 = vset.pattern.permute.xlu0 21
    %224 = vperm.xlu0 %223, %v149
    %v225 = vpop.permute.xlu0 %224
    %v229 = vcombine.high %v221, %v221
    %230 = vrot.lane.b32.xlu0 %v221, 80
    %v231 = vpop.permute.xlu0 %230
    %232 = vrot.lane.b32.xlu0 %v229, 80
    %v233 = vpop.permute.xlu0 %232
    %234 = vrot.lane.b32.xlu0 %v222, 80
    %v235 = vpop.permute.xlu0 %234
    %vm236 = vcmask 654336
    %v237 = vsel %vm236, %v231, %v233
    %v238 = vsel %vm236, %v233, %v235
    %v241 = vmul.f32 %v225, %v237
    %v242 = vmul.f32 %v225, %v238
    %v243 = vadd.f32 %v195, %v241
    %v244 = vadd.f32 %v196, %v242
    %v245 = vld [vmem:[#allocation2] sm:$0xff]
    %v246 = vld [vmem:[#allocation2 + $0x8] sm:$0xf]
    %247 = vset.pattern.permute.xlu0 28
    %248 = vperm.xlu0 %247, %v149
    %v249 = vpop.permute.xlu0 %248
    %v253 = vcombine.high %v245, %v245
    %254 = vrot.lane.b32.xlu0 %v245, 64
    %v255 = vpop.permute.xlu0 %254
    %256 = vrot.lane.b32.xlu0 %v253, 64
    %v257 = vpop.permute.xlu0 %256
    %258 = vrot.lane.b32.xlu0 %v246, 64
    %v259 = vpop.permute.xlu0 %258
    %vm260 = vcmask 523264
    %v261 = vsel %vm260, %v255, %v257
    %v262 = vsel %vm260, %v257, %v259
    %v265 = vmul.f32 %v249, %v261
    %v266 = vmul.f32 %v249, %v262
    %v267 = vadd.f32 %v219, %v265
    %v268 = vadd.f32 %v220, %v266
    %v269 = vld [vmem:[#allocation2] sm:$0xff]
    %v270 = vld [vmem:[#allocation2 + $0x8] sm:$0xf]
    %271 = vset.pattern.permute.xlu0 35
    %272 = vperm.xlu0 %271, %v149
    %v273 = vpop.permute.xlu0 %272
    %v277 = vcombine.high %v269, %v269
    %278 = vrot.lane.b32.xlu0 %v269, 48
    %v279 = vpop.permute.xlu0 %278
    %280 = vrot.lane.b32.xlu0 %v277, 48
    %v281 = vpop.permute.xlu0 %280
    %282 = vrot.lane.b32.xlu0 %v270, 48
    %v283 = vpop.permute.xlu0 %282
    %vm284 = vcmask 392192
    %v285 = vsel %vm284, %v279, %v281
    %v286 = vsel %vm284, %v281, %v283
    %v289 = vmul.f32 %v273, %v285
    %v290 = vmul.f32 %v273, %v286
    %v291 = vadd.f32 %v243, %v289
    %v292 = vadd.f32 %v244, %v290
    %v293 = vld [vmem:[#allocation2] sm:$0xff]
    %v294 = vld [vmem:[#allocation2 + $0x8] sm:$0xf]
    %295 = vset.pattern.permute.xlu0 42
    %296 = vperm.xlu0 %295, %v149
    %v297 = vpop.permute.xlu0 %296
    %v301 = vcombine.high %v293, %v293
    %302 = vrot.lane.b32.xlu0 %v293, 32
    %v303 = vpop.permute.xlu0 %302
    %304 = vrot.lane.b32.xlu0 %v301, 32
    %v305 = vpop.permute.xlu0 %304
    %306 = vrot.lane.b32.xlu0 %v294, 32
    %v307 = vpop.permute.xlu0 %306
    %vm308 = vcmask 261120
    %v309 = vsel %vm308, %v303, %v305
    %v310 = vsel %vm308, %v305, %v307
    %v313 = vmul.f32 %v297, %v309
    %v314 = vmul.f32 %v297, %v310
    %v315 = vadd.f32 %v267, %v313
    %v316 = vadd.f32 %v268, %v314
    %v317 = vadd.f32 %v315, %v291
    %v318 = vadd.f32 %v316, %v292
    %v319 = vmul.f32 %v158, %v317
    %v320 = vmul.f32 %v159, %v318
    %v321 = vadd.f32 %v319, 0.0
    %v322 = vadd.f32 %v320, 0.0
    %vm323 = vcmp.ge.s32.totalorder %v147, 2
    %vm324 = vcmp.ge.s32.totalorder %v148, 2
    %vm325 = vcmp.lt.s32.totalorder %v147, 18
    %vm326 = vcmp.lt.s32.totalorder %v148, 18
    %vm327 = vmand %vm323, %vm325
    %vm328 = vmand %vm324, %vm326
    %v329 = vsel %vm327, 1, 0
    %v330 = vsel %vm328, 1, 0
    %v331 = vcvt.s32.f32 %v329
    %v332 = vcvt.s32.f32 %v330
    %v333 = vld [vmem:[#allocation2] sm:$0xff]
    %v334 = vld [vmem:[#allocation2 + $0x8] sm:$0xf]
    %335 = vset.pattern.permute.xlu0 1
    %336 = vperm.xlu0 %335, %v149
    %v337 = vpop.permute.xlu0 %336
    %v341 = vcombine.high %v333, %v333
    %342 = vrot.lane.b32.xlu0 %v333, 127
    %v343 = vpop.permute.xlu0 %342
    %344 = vrot.lane.b32.xlu0 %v341, 127
    %v345 = vpop.permute.xlu0 %344
    %346 = vrot.lane.b32.xlu0 %v334, 127
    %v347 = vpop.permute.xlu0 %346
    %vm348 = vcmask 1039360
    %v349 = vsel %vm348, %v343, %v345
    %v350 = vsel %vm348, %v345, %v347
    %v353 = vmul.f32 %v337, %v349
    %v354 = vmul.f32 %v337, %v350
    %v355 = vadd.f32 %v353, 0.0
    %v356 = vadd.f32 %v354, 0.0
    %v357 = vld [vmem:[#allocation2] sm:$0xff]
    %v358 = vld [vmem:[#allocation2 + $0x8] sm:$0xf]
    %359 = vset.pattern.permute.xlu0 8
    %360 = vperm.xlu0 %359, %v149
    %v361 = vpop.permute.xlu0 %360
    %v365 = vcombine.high %v357, %v357
    %366 = vrot.lane.b32.xlu0 %v357, 111
    %v367 = vpop.permute.xlu0 %366
    %368 = vrot.lane.b32.xlu0 %v365, 111
    %v369 = vpop.permute.xlu0 %368
    %370 = vrot.lane.b32.xlu0 %v358, 111
    %v371 = vpop.permute.xlu0 %370
    %vm372 = vcmask 908288
    %v373 = vsel %vm372, %v367, %v369
    %v374 = vsel %vm372, %v369, %v371
    %v377 = vmul.f32 %v361, %v373
    %v378 = vmul.f32 %v361, %v374
    %v379 = vadd.f32 %v377, 0.0
    %v380 = vadd.f32 %v378, 0.0
    %v381 = vld [vmem:[#allocation2] sm:$0xff]
    %v382 = vld [vmem:[#allocation2 + $0x8] sm:$0xf]
    %383 = vset.pattern.permute.xlu0 15
    %384 = vperm.xlu0 %383, %v149
    %v385 = vpop.permute.xlu0 %384
    %v389 = vcombine.high %v381, %v381
    %390 = vrot.lane.b32.xlu0 %v381, 95
    %v391 = vpop.permute.xlu0 %390
    %392 = vrot.lane.b32.xlu0 %v389, 95
    %v393 = vpop.permute.xlu0 %392
    %394 = vrot.lane.b32.xlu0 %v382, 95
    %v395 = vpop.permute.xlu0 %394
    %vm396 = vcmask 777216
    %v397 = vsel %vm396, %v391, %v393
    %v398 = vsel %vm396, %v393, %v395
    %v401 = vmul.f32 %v385, %v397
    %v402 = vmul.f32 %v385, %v398
    %v403 = vadd.f32 %v355, %v401
    %v404 = vadd.f32 %v356, %v402
    %v405 = vld [vmem:[#allocation2] sm:$0xff]
    %v406 = vld [vmem:[#allocation2 + $0x8] sm:$0xf]
    %407 = vset.pattern.permute.xlu0 22
    %408 = vperm.xlu0 %407, %v149
    %v409 = vpop.permute.xlu0 %408
    %v413 = vcombine.high %v405, %v405
    %414 = vrot.lane.b32.xlu0 %v405, 79
    %v415 = vpop.permute.xlu0 %414
    %416 = vrot.lane.b32.xlu0 %v413, 79
    %v417 = vpop.permute.xlu0 %416
    %418 = vrot.lane.b32.xlu0 %v406, 79
    %v419 = vpop.permute.xlu0 %418
    %vm420 = vcmask 646144
    %v421 = vsel %vm420, %v415, %v417
    %v422 = vsel %vm420, %v417, %v419
    %v425 = vmul.f32 %v409, %v421
    %v426 = vmul.f32 %v409, %v422
    %v427 = vadd.f32 %v379, %v425
    %v428 = vadd.f32 %v380, %v426
    %v429 = vld [vmem:[#allocation2] sm:$0xff]
    %v430 = vld [vmem:[#allocation2 + $0x8] sm:$0xf]
    %431 = vset.pattern.permute.xlu0 29
    %432 = vperm.xlu0 %431, %v149
    %v433 = vpop.permute.xlu0 %432
    %v437 = vcombine.high %v429, %v429
    %438 = vrot.lane.b32.xlu0 %v429, 63
    %v439 = vpop.permute.xlu0 %438
    %440 = vrot.lane.b32.xlu0 %v437, 63
    %v441 = vpop.permute.xlu0 %440
    %442 = vrot.lane.b32.xlu0 %v430, 63
    %v443 = vpop.permute.xlu0 %442
    %vm444 = vcmask 515072
    %v445 = vsel %vm444, %v439, %v441
    %v446 = vsel %vm444, %v441, %v443
    %v449 = vmul.f32 %v433, %v445
    %v450 = vmul.f32 %v433, %v446
    %v451 = vadd.f32 %v403, %v449
    %v452 = vadd.f32 %v404, %v450
    %v453 = vld [vmem:[#allocation2] sm:$0xff]
    %v454 = vld [vmem:[#allocation2 + $0x8] sm:$0xf]
    %455 = vset.pattern.permute.xlu0 36
    %456 = vperm.xlu0 %455, %v149
    %v457 = vpop.permute.xlu0 %456
    %v461 = vcombine.high %v453, %v453
    %462 = vrot.lane.b32.xlu0 %v453, 47
    %v463 = vpop.permute.xlu0 %462
    %464 = vrot.lane.b32.xlu0 %v461, 47
    %v465 = vpop.permute.xlu0 %464
    %466 = vrot.lane.b32.xlu0 %v454, 47
    %v467 = vpop.permute.xlu0 %466
    %vm468 = vcmask 384000
    %v469 = vsel %vm468, %v463, %v465
    %v470 = vsel %vm468, %v465, %v467
    %v473 = vmul.f32 %v457, %v469
    %v474 = vmul.f32 %v457, %v470
    %v475 = vadd.f32 %v427, %v473
    %v476 = vadd.f32 %v428, %v474
    %v477 = vld [vmem:[#allocation2] sm:$0xff]
    %v478 = vld [vmem:[#allocation2 + $0x8] sm:$0xf]
    %479 = vset.pattern.permute.xlu0 43
    %480 = vperm.xlu0 %479, %v149
    %v481 = vpop.permute.xlu0 %480
    %v485 = vcombine.high %v477, %v477
    %486 = vrot.lane.b32.xlu0 %v477, 31
    %v487 = vpop.permute.xlu0 %486
    %488 = vrot.lane.b32.xlu0 %v485, 31
    %v489 = vpop.permute.xlu0 %488
    %490 = vrot.lane.b32.xlu0 %v478, 31
    %v491 = vpop.permute.xlu0 %490
    %vm492 = vcmask 252928
    %v493 = vsel %vm492, %v487, %v489
    %v494 = vsel %vm492, %v489, %v491
    %v497 = vmul.f32 %v481, %v493
    %v498 = vmul.f32 %v481, %v494
    %v499 = vadd.f32 %v451, %v497
    %v500 = vadd.f32 %v452, %v498
    %v501 = vadd.f32 %v499, %v475
    %v502 = vadd.f32 %v500, %v476
    %v503 = vmul.f32 %v331, %v501
    %v504 = vmul.f32 %v332, %v502
    %v505 = vadd.f32 %v503, 0.0
    %v506 = vadd.f32 %v504, 0.0
    %vm507 = vcmp.ge.s32.totalorder %v147, 1
    %vm508 = vcmp.ge.s32.totalorder %v148, 1
    %vm509 = vcmp.lt.s32.totalorder %v147, 17
    %vm510 = vcmp.lt.s32.totalorder %v148, 17
    %vm511 = vmand %vm507, %vm509
    %vm512 = vmand %vm508, %vm510
    %v513 = vsel %vm511, 1, 0
    %v514 = vsel %vm512, 1, 0
    %v515 = vcvt.s32.f32 %v513
    %v516 = vcvt.s32.f32 %v514
    %v517 = vld [vmem:[#allocation2] sm:$0xff]
    %v518 = vld [vmem:[#allocation2 + $0x8] sm:$0xf]
    %519 = vset.pattern.permute.xlu0 2
    %520 = vperm.xlu0 %519, %v149
    %v521 = vpop.permute.xlu0 %520
    %v525 = vcombine.high %v517, %v517
    %526 = vrot.lane.b32.xlu0 %v517, 126
    %v527 = vpop.permute.xlu0 %526
    %528 = vrot.lane.b32.xlu0 %v525, 126
    %v529 = vpop.permute.xlu0 %528
    %530 = vrot.lane.b32.xlu0 %v518, 126
    %v531 = vpop.permute.xlu0 %530
    %vm532 = vcmask 1031168
    %v533 = vsel %vm532, %v527, %v529
    %v534 = vsel %vm532, %v529, %v531
    %v537 = vmul.f32 %v521, %v533
    %v538 = vmul.f32 %v521, %v534
    %v539 = vadd.f32 %v537, 0.0
    %v540 = vadd.f32 %v538, 0.0
    %v541 = vld [vmem:[#allocation2] sm:$0xff]
    %v542 = vld [vmem:[#allocation2 + $0x8] sm:$0xf]
    %543 = vset.pattern.permute.xlu0 9
    %544 = vperm.xlu0 %543, %v149
    %v545 = vpop.permute.xlu0 %544
    %v549 = vcombine.high %v541, %v541
    %550 = vrot.lane.b32.xlu0 %v541, 110
    %v551 = vpop.permute.xlu0 %550
    %552 = vrot.lane.b32.xlu0 %v549, 110
    %v553 = vpop.permute.xlu0 %552
    %554 = vrot.lane.b32.xlu0 %v542, 110
    %v555 = vpop.permute.xlu0 %554
    %vm556 = vcmask 900096
    %v557 = vsel %vm556, %v551, %v553
    %v558 = vsel %vm556, %v553, %v555
    %v561 = vmul.f32 %v545, %v557
    %v562 = vmul.f32 %v545, %v558
    %v563 = vadd.f32 %v561, 0.0
    %v564 = vadd.f32 %v562, 0.0
    %v565 = vld [vmem:[#allocation2] sm:$0xff]
    %v566 = vld [vmem:[#allocation2 + $0x8] sm:$0xf]
    %567 = vset.pattern.permute.xlu0 16
    %568 = vperm.xlu0 %567, %v149
    %v569 = vpop.permute.xlu0 %568
    %v573 = vcombine.high %v565, %v565
    %574 = vrot.lane.b32.xlu0 %v565, 94
    %v575 = vpop.permute.xlu0 %574
    %576 = vrot.lane.b32.xlu0 %v573, 94
    %v577 = vpop.permute.xlu0 %576
    %578 = vrot.lane.b32.xlu0 %v566, 94
    %v579 = vpop.permute.xlu0 %578
    %vm580 = vcmask 769024
    %v581 = vsel %vm580, %v575, %v577
    %v582 = vsel %vm580, %v577, %v579
    %v585 = vmul.f32 %v569, %v581
    %v586 = vmul.f32 %v569, %v582
    %v587 = vadd.f32 %v539, %v585
    %v588 = vadd.f32 %v540, %v586
    %v589 = vld [vmem:[#allocation2] sm:$0xff]
    %v590 = vld [vmem:[#allocation2 + $0x8] sm:$0xf]
    %591 = vset.pattern.permute.xlu0 23
    %592 = vperm.xlu0 %591, %v149
    %v593 = vpop.permute.xlu0 %592
    %v597 = vcombine.high %v589, %v589
    %598 = vrot.lane.b32.xlu0 %v589, 78
    %v599 = vpop.permute.xlu0 %598
    %600 = vrot.lane.b32.xlu0 %v597, 78
    %v601 = vpop.permute.xlu0 %600
    %602 = vrot.lane.b32.xlu0 %v590, 78
    %v603 = vpop.permute.xlu0 %602
    %vm604 = vcmask 637952
    %v605 = vsel %vm604, %v599, %v601
    %v606 = vsel %vm604, %v601, %v603
    %v609 = vmul.f32 %v593, %v605
    %v610 = vmul.f32 %v593, %v606
    %v611 = vadd.f32 %v563, %v609
    %v612 = vadd.f32 %v564, %v610
    %v613 = vld [vmem:[#allocation2] sm:$0xff]
    %v614 = vld [vmem:[#allocation2 + $0x8] sm:$0xf]
    %615 = vset.pattern.permute.xlu0 30
    %616 = vperm.xlu0 %615, %v149
    %v617 = vpop.permute.xlu0 %616
    %v621 = vcombine.high %v613, %v613
    %622 = vrot.lane.b32.xlu0 %v613, 62
    %v623 = vpop.permute.xlu0 %622
    %624 = vrot.lane.b32.xlu0 %v621, 62
    %v625 = vpop.permute.xlu0 %624
    %626 = vrot.lane.b32.xlu0 %v614, 62
    %v627 = vpop.permute.xlu0 %626
    %vm628 = vcmask 506880
    %v629 = vsel %vm628, %v623, %v625
    %v630 = vsel %vm628, %v625, %v627
    %v633 = vmul.f32 %v617, %v629
    %v634 = vmul.f32 %v617, %v630
    %v635 = vadd.f32 %v587, %v633
    %v636 = vadd.f32 %v588, %v634
    %v637 = vld [vmem:[#allocation2] sm:$0xff]
    %v638 = vld [vmem:[#allocation2 + $0x8] sm:$0xf]
    %639 = vset.pattern.permute.xlu0 37
    %640 = vperm.xlu0 %639, %v149
    %v641 = vpop.permute.xlu0 %640
    %v645 = vcombine.high %v637, %v637
    %646 = vrot.lane.b32.xlu0 %v637, 46
    %v647 = vpop.permute.xlu0 %646
    %648 = vrot.lane.b32.xlu0 %v645, 46
    %v649 = vpop.permute.xlu0 %648
    %650 = vrot.lane.b32.xlu0 %v638, 46
    %v651 = vpop.permute.xlu0 %650
    %vm652 = vcmask 375808
    %v653 = vsel %vm652, %v647, %v649
    %v654 = vsel %vm652, %v649, %v651
    %v657 = vmul.f32 %v641, %v653
    %v658 = vmul.f32 %v641, %v654
    %v659 = vadd.f32 %v611, %v657
    %v660 = vadd.f32 %v612, %v658
    %v661 = vld [vmem:[#allocation2] sm:$0xff]
    %v662 = vld [vmem:[#allocation2 + $0x8] sm:$0xf]
    %663 = vset.pattern.permute.xlu0 44
    %664 = vperm.xlu0 %663, %v149
    %v665 = vpop.permute.xlu0 %664
    %v669 = vcombine.high %v661, %v661
    %670 = vrot.lane.b32.xlu0 %v661, 30
    %v671 = vpop.permute.xlu0 %670
    %672 = vrot.lane.b32.xlu0 %v669, 30
    %v673 = vpop.permute.xlu0 %672
    %674 = vrot.lane.b32.xlu0 %v662, 30
    %v675 = vpop.permute.xlu0 %674
    %vm676 = vcmask 244736
    %v677 = vsel %vm676, %v671, %v673
    %v678 = vsel %vm676, %v673, %v675
    %v681 = vmul.f32 %v665, %v677
    %v682 = vmul.f32 %v665, %v678
    %v683 = vadd.f32 %v635, %v681
    %v684 = vadd.f32 %v636, %v682
    %v685 = vadd.f32 %v683, %v659
    %v686 = vadd.f32 %v684, %v660
    %v687 = vmul.f32 %v515, %v685
    %v688 = vmul.f32 %v516, %v686
    %v689 = vadd.f32 %v321, %v687
    %v690 = vadd.f32 %v322, %v688
    %vm691 = vcmp.ge.s32.totalorder %v147, 0
    %vm692 = vcmp.ge.s32.totalorder %v148, 0
    %vm693 = vcmp.lt.s32.totalorder %v147, 16
    %vm694 = vcmp.lt.s32.totalorder %v148, 16
    %vm695 = vmand %vm691, %vm693
    %vm696 = vmand %vm692, %vm694
    %v697 = vsel %vm695, 1, 0
    %v698 = vsel %vm696, 1, 0
    %v699 = vcvt.s32.f32 %v697
    %v700 = vcvt.s32.f32 %v698
    %v701 = vld [vmem:[#allocation2] sm:$0xff]
    %v702 = vld [vmem:[#allocation2 + $0x8] sm:$0xf]
    %703 = vset.pattern.permute.xlu0 3
    %704 = vperm.xlu0 %703, %v149
    %v705 = vpop.permute.xlu0 %704
    %v709 = vcombine.high %v701, %v701
    %710 = vrot.lane.b32.xlu0 %v701, 125
    %v711 = vpop.permute.xlu0 %710
    %712 = vrot.lane.b32.xlu0 %v709, 125
    %v713 = vpop.permute.xlu0 %712
    %714 = vrot.lane.b32.xlu0 %v702, 125
    %v715 = vpop.permute.xlu0 %714
    %vm716 = vcmask 1022976
    %v717 = vsel %vm716, %v711, %v713
    %v718 = vsel %vm716, %v713, %v715
    %v721 = vmul.f32 %v705, %v717
    %v722 = vmul.f32 %v705, %v718
    %v723 = vadd.f32 %v721, 0.0
    %v724 = vadd.f32 %v722, 0.0
    %v725 = vld [vmem:[#allocation2] sm:$0xff]
    %v726 = vld [vmem:[#allocation2 + $0x8] sm:$0xf]
    %727 = vset.pattern.permute.xlu0 10
    %728 = vperm.xlu0 %727, %v149
    %v729 = vpop.permute.xlu0 %728
    %v733 = vcombine.high %v725, %v725
    %734 = vrot.lane.b32.xlu0 %v725, 109
    %v735 = vpop.permute.xlu0 %734
    %736 = vrot.lane.b32.xlu0 %v733, 109
    %v737 = vpop.permute.xlu0 %736
    %738 = vrot.lane.b32.xlu0 %v726, 109
    %v739 = vpop.permute.xlu0 %738
    %vm740 = vcmask 891904
    %v741 = vsel %vm740, %v735, %v737
    %v742 = vsel %vm740, %v737, %v739
    %v745 = vmul.f32 %v729, %v741
    %v746 = vmul.f32 %v729, %v742
    %v747 = vadd.f32 %v745, 0.0
    %v748 = vadd.f32 %v746, 0.0
    %v749 = vld [vmem:[#allocation2] sm:$0xff]
    %v750 = vld [vmem:[#allocation2 + $0x8] sm:$0xf]
    %751 = vset.pattern.permute.xlu0 17
    %752 = vperm.xlu0 %751, %v149
    %v753 = vpop.permute.xlu0 %752
    %v757 = vcombine.high %v749, %v749
    %758 = vrot.lane.b32.xlu0 %v749, 93
    %v759 = vpop.permute.xlu0 %758
    %760 = vrot.lane.b32.xlu0 %v757, 93
    %v761 = vpop.permute.xlu0 %760
    %762 = vrot.lane.b32.xlu0 %v750, 93
    %v763 = vpop.permute.xlu0 %762
    %vm764 = vcmask 760832
    %v765 = vsel %vm764, %v759, %v761
    %v766 = vsel %vm764, %v761, %v763
    %v769 = vmul.f32 %v753, %v765
    %v770 = vmul.f32 %v753, %v766
    %v771 = vadd.f32 %v723, %v769
    %v772 = vadd.f32 %v724, %v770
    %v773 = vld [vmem:[#allocation2] sm:$0xff]
    %v774 = vld [vmem:[#allocation2 + $0x8] sm:$0xf]
    %775 = vset.pattern.permute.xlu0 24
    %776 = vperm.xlu0 %775, %v149
    %v777 = vpop.permute.xlu0 %776
    %v781 = vcombine.high %v773, %v773
    %782 = vrot.lane.b32.xlu0 %v773, 77
    %v783 = vpop.permute.xlu0 %782
    %784 = vrot.lane.b32.xlu0 %v781, 77
    %v785 = vpop.permute.xlu0 %784
    %786 = vrot.lane.b32.xlu0 %v774, 77
    %v787 = vpop.permute.xlu0 %786
    %vm788 = vcmask 629760
    %v789 = vsel %vm788, %v783, %v785
    %v790 = vsel %vm788, %v785, %v787
    %v793 = vmul.f32 %v777, %v789
    %v794 = vmul.f32 %v777, %v790
    %v795 = vadd.f32 %v747, %v793
    %v796 = vadd.f32 %v748, %v794
    %v797 = vld [vmem:[#allocation2] sm:$0xff]
    %v798 = vld [vmem:[#allocation2 + $0x8] sm:$0xf]
    %799 = vset.pattern.permute.xlu0 31
    %800 = vperm.xlu0 %799, %v149
    %v801 = vpop.permute.xlu0 %800
    %v805 = vcombine.high %v797, %v797
    %806 = vrot.lane.b32.xlu0 %v797, 61
    %v807 = vpop.permute.xlu0 %806
    %808 = vrot.lane.b32.xlu0 %v805, 61
    %v809 = vpop.permute.xlu0 %808
    %810 = vrot.lane.b32.xlu0 %v798, 61
    %v811 = vpop.permute.xlu0 %810
    %vm812 = vcmask 498688
    %v813 = vsel %vm812, %v807, %v809
    %v814 = vsel %vm812, %v809, %v811
    %v817 = vmul.f32 %v801, %v813
    %v818 = vmul.f32 %v801, %v814
    %v819 = vadd.f32 %v771, %v817
    %v820 = vadd.f32 %v772, %v818
    %v821 = vld [vmem:[#allocation2] sm:$0xff]
    %v822 = vld [vmem:[#allocation2 + $0x8] sm:$0xf]
    %823 = vset.pattern.permute.xlu0 38
    %824 = vperm.xlu0 %823, %v149
    %v825 = vpop.permute.xlu0 %824
    %v829 = vcombine.high %v821, %v821
    %830 = vrot.lane.b32.xlu0 %v821, 45
    %v831 = vpop.permute.xlu0 %830
    %832 = vrot.lane.b32.xlu0 %v829, 45
    %v833 = vpop.permute.xlu0 %832
    %834 = vrot.lane.b32.xlu0 %v822, 45
    %v835 = vpop.permute.xlu0 %834
    %vm836 = vcmask 367616
    %v837 = vsel %vm836, %v831, %v833
    %v838 = vsel %vm836, %v833, %v835
    %v841 = vmul.f32 %v825, %v837
    %v842 = vmul.f32 %v825, %v838
    %v843 = vadd.f32 %v795, %v841
    %v844 = vadd.f32 %v796, %v842
    %v845 = vld [vmem:[#allocation2] sm:$0xff]
    %v846 = vld [vmem:[#allocation2 + $0x8] sm:$0xf]
    %847 = vset.pattern.permute.xlu0 45
    %848 = vperm.xlu0 %847, %v149
    %v849 = vpop.permute.xlu0 %848
    %v853 = vcombine.high %v845, %v845
    %854 = vrot.lane.b32.xlu0 %v845, 29
    %v855 = vpop.permute.xlu0 %854
    %856 = vrot.lane.b32.xlu0 %v853, 29
    %v857 = vpop.permute.xlu0 %856
    %858 = vrot.lane.b32.xlu0 %v846, 29
    %v859 = vpop.permute.xlu0 %858
    %vm860 = vcmask 236544
    %v861 = vsel %vm860, %v855, %v857
    %v862 = vsel %vm860, %v857, %v859
    %v865 = vmul.f32 %v849, %v861
    %v866 = vmul.f32 %v849, %v862
    %v867 = vadd.f32 %v819, %v865
    %v868 = vadd.f32 %v820, %v866
    %v869 = vadd.f32 %v867, %v843
    %v870 = vadd.f32 %v868, %v844
    %v871 = vmul.f32 %v699, %v869
    %v872 = vmul.f32 %v700, %v870
    %v873 = vadd.f32 %v505, %v871
    %v874 = vadd.f32 %v506, %v872
    %vm875 = vcmp.ge.s32.totalorder %v147, 4294967295
    %vm876 = vcmp.ge.s32.totalorder %v148, 4294967295
    %vm877 = vcmp.lt.s32.totalorder %v147, 15
    %vm878 = vcmp.lt.s32.totalorder %v148, 15
    %vm879 = vmand %vm875, %vm877
    %vm880 = vmand %vm876, %vm878
    %v881 = vsel %vm879, 1, 0
    %v882 = vsel %vm880, 1, 0
    %v883 = vcvt.s32.f32 %v881
    %v884 = vcvt.s32.f32 %v882
    %v885 = vld [vmem:[#allocation2] sm:$0xff]
    %v886 = vld [vmem:[#allocation2 + $0x8] sm:$0xf]
    %887 = vset.pattern.permute.xlu0 4
    %888 = vperm.xlu0 %887, %v149
    %v889 = vpop.permute.xlu0 %888
    %v893 = vcombine.high %v885, %v885
    %894 = vrot.lane.b32.xlu0 %v885, 124
    %v895 = vpop.permute.xlu0 %894
    %896 = vrot.lane.b32.xlu0 %v893, 124
    %v897 = vpop.permute.xlu0 %896
    %898 = vrot.lane.b32.xlu0 %v886, 124
    %v899 = vpop.permute.xlu0 %898
    %vm900 = vcmask 1014784
    %v901 = vsel %vm900, %v895, %v897
    %v902 = vsel %vm900, %v897, %v899
    %v905 = vmul.f32 %v889, %v901
    %v906 = vmul.f32 %v889, %v902
    %v907 = vadd.f32 %v905, 0.0
    %v908 = vadd.f32 %v906, 0.0
    %v909 = vld [vmem:[#allocation2] sm:$0xff]
    %v910 = vld [vmem:[#allocation2 + $0x8] sm:$0xf]
    %911 = vset.pattern.permute.xlu0 11
    %912 = vperm.xlu0 %911, %v149
    %v913 = vpop.permute.xlu0 %912
    %v917 = vcombine.high %v909, %v909
    %918 = vrot.lane.b32.xlu0 %v909, 108
    %v919 = vpop.permute.xlu0 %918
    %920 = vrot.lane.b32.xlu0 %v917, 108
    %v921 = vpop.permute.xlu0 %920
    %922 = vrot.lane.b32.xlu0 %v910, 108
    %v923 = vpop.permute.xlu0 %922
    %vm924 = vcmask 883712
    %v925 = vsel %vm924, %v919, %v921
    %v926 = vsel %vm924, %v921, %v923
    %v929 = vmul.f32 %v913, %v925
    %v930 = vmul.f32 %v913, %v926
    %v931 = vadd.f32 %v929, 0.0
    %v932 = vadd.f32 %v930, 0.0
    %v933 = vld [vmem:[#allocation2] sm:$0xff]
    %v934 = vld [vmem:[#allocation2 + $0x8] sm:$0xf]
    %935 = vset.pattern.permute.xlu0 18
    %936 = vperm.xlu0 %935, %v149
    %v937 = vpop.permute.xlu0 %936
    %v941 = vcombine.high %v933, %v933
    %942 = vrot.lane.b32.xlu0 %v933, 92
    %v943 = vpop.permute.xlu0 %942
    %944 = vrot.lane.b32.xlu0 %v941, 92
    %v945 = vpop.permute.xlu0 %944
    %946 = vrot.lane.b32.xlu0 %v934, 92
    %v947 = vpop.permute.xlu0 %946
    %vm948 = vcmask 752640
    %v949 = vsel %vm948, %v943, %v945
    %v950 = vsel %vm948, %v945, %v947
    %v953 = vmul.f32 %v937, %v949
    %v954 = vmul.f32 %v937, %v950
    %v955 = vadd.f32 %v907, %v953
    %v956 = vadd.f32 %v908, %v954
    %v957 = vld [vmem:[#allocation2] sm:$0xff]
    %v958 = vld [vmem:[#allocation2 + $0x8] sm:$0xf]
    %959 = vset.pattern.permute.xlu0 25
    %960 = vperm.xlu0 %959, %v149
    %v961 = vpop.permute.xlu0 %960
    %v965 = vcombine.high %v957, %v957
    %966 = vrot.lane.b32.xlu0 %v957, 76
    %v967 = vpop.permute.xlu0 %966
    %968 = vrot.lane.b32.xlu0 %v965, 76
    %v969 = vpop.permute.xlu0 %968
    %970 = vrot.lane.b32.xlu0 %v958, 76
    %v971 = vpop.permute.xlu0 %970
    %vm972 = vcmask 621568
    %v973 = vsel %vm972, %v967, %v969
    %v974 = vsel %vm972, %v969, %v971
    %v977 = vmul.f32 %v961, %v973
    %v978 = vmul.f32 %v961, %v974
    %v979 = vadd.f32 %v931, %v977
    %v980 = vadd.f32 %v932, %v978
    %v981 = vld [vmem:[#allocation2] sm:$0xff]
    %v982 = vld [vmem:[#allocation2 + $0x8] sm:$0xf]
    %983 = vset.pattern.permute.xlu0 32
    %984 = vperm.xlu0 %983, %v149
    %v985 = vpop.permute.xlu0 %984
    %v989 = vcombine.high %v981, %v981
    %990 = vrot.lane.b32.xlu0 %v981, 60
    %v991 = vpop.permute.xlu0 %990
    %992 = vrot.lane.b32.xlu0 %v989, 60
    %v993 = vpop.permute.xlu0 %992
    %994 = vrot.lane.b32.xlu0 %v982, 60
    %v995 = vpop.permute.xlu0 %994
    %vm996 = vcmask 490496
    %v997 = vsel %vm996, %v991, %v993
    %v998 = vsel %vm996, %v993, %v995
    %v1001 = vmul.f32 %v985, %v997
    %v1002 = vmul.f32 %v985, %v998
    %v1003 = vadd.f32 %v955, %v1001
    %v1004 = vadd.f32 %v956, %v1002
    %v1005 = vld [vmem:[#allocation2] sm:$0xff]
    %v1006 = vld [vmem:[#allocation2 + $0x8] sm:$0xf]
    %1007 = vset.pattern.permute.xlu0 39
    %1008 = vperm.xlu0 %1007, %v149
    %v1009 = vpop.permute.xlu0 %1008
    %v1013 = vcombine.high %v1005, %v1005
    %1014 = vrot.lane.b32.xlu0 %v1005, 44
    %v1015 = vpop.permute.xlu0 %1014
    %1016 = vrot.lane.b32.xlu0 %v1013, 44
    %v1017 = vpop.permute.xlu0 %1016
    %1018 = vrot.lane.b32.xlu0 %v1006, 44
    %v1019 = vpop.permute.xlu0 %1018
    %vm1020 = vcmask 359424
    %v1021 = vsel %vm1020, %v1015, %v1017
    %v1022 = vsel %vm1020, %v1017, %v1019
    %v1025 = vmul.f32 %v1009, %v1021
    %v1026 = vmul.f32 %v1009, %v1022
    %v1027 = vadd.f32 %v979, %v1025
    %v1028 = vadd.f32 %v980, %v1026
    %v1029 = vld [vmem:[#allocation2] sm:$0xff]
    %v1030 = vld [vmem:[#allocation2 + $0x8] sm:$0xf]
    %1031 = vset.pattern.permute.xlu0 46
    %1032 = vperm.xlu0 %1031, %v149
    %v1033 = vpop.permute.xlu0 %1032
    %v1037 = vcombine.high %v1029, %v1029
    %1038 = vrot.lane.b32.xlu0 %v1029, 28
    %v1039 = vpop.permute.xlu0 %1038
    %1040 = vrot.lane.b32.xlu0 %v1037, 28
    %v1041 = vpop.permute.xlu0 %1040
    %1042 = vrot.lane.b32.xlu0 %v1030, 28
    %v1043 = vpop.permute.xlu0 %1042
    %vm1044 = vcmask 228352
    %v1045 = vsel %vm1044, %v1039, %v1041
    %v1046 = vsel %vm1044, %v1041, %v1043
    %v1049 = vmul.f32 %v1033, %v1045
    %v1050 = vmul.f32 %v1033, %v1046
    %v1051 = vadd.f32 %v1003, %v1049
    %v1052 = vadd.f32 %v1004, %v1050
    %v1053 = vadd.f32 %v1051, %v1027
    %v1054 = vadd.f32 %v1052, %v1028
    %v1055 = vmul.f32 %v883, %v1053
    %v1056 = vmul.f32 %v884, %v1054
    %v1057 = vadd.f32 %v689, %v1055
    %v1058 = vadd.f32 %v690, %v1056
    %vm1059 = vcmp.ge.s32.totalorder %v147, 4294967294
    %vm1060 = vcmp.ge.s32.totalorder %v148, 4294967294
    %vm1061 = vcmp.lt.s32.totalorder %v147, 14
    %vm1062 = vcmp.lt.s32.totalorder %v148, 14
    %vm1063 = vmand %vm1059, %vm1061
    %vm1064 = vmand %vm1060, %vm1062
    %v1065 = vsel %vm1063, 1, 0
    %v1066 = vsel %vm1064, 1, 0
    %v1067 = vcvt.s32.f32 %v1065
    %v1068 = vcvt.s32.f32 %v1066
    %v1069 = vld [vmem:[#allocation2] sm:$0xff]
    %v1070 = vld [vmem:[#allocation2 + $0x8] sm:$0xf]
    %1071 = vset.pattern.permute.xlu0 5
    %1072 = vperm.xlu0 %1071, %v149
    %v1073 = vpop.permute.xlu0 %1072
    %v1077 = vcombine.high %v1069, %v1069
    %1078 = vrot.lane.b32.xlu0 %v1069, 123
    %v1079 = vpop.permute.xlu0 %1078
    %1080 = vrot.lane.b32.xlu0 %v1077, 123
    %v1081 = vpop.permute.xlu0 %1080
    %1082 = vrot.lane.b32.xlu0 %v1070, 123
    %v1083 = vpop.permute.xlu0 %1082
    %vm1084 = vcmask 1006592
    %v1085 = vsel %vm1084, %v1079, %v1081
    %v1086 = vsel %vm1084, %v1081, %v1083
    %v1089 = vmul.f32 %v1073, %v1085
    %v1090 = vmul.f32 %v1073, %v1086
    %v1091 = vadd.f32 %v1089, 0.0
    %v1092 = vadd.f32 %v1090, 0.0
    %v1093 = vld [vmem:[#allocation2] sm:$0xff]
    %v1094 = vld [vmem:[#allocation2 + $0x8] sm:$0xf]
    %1095 = vset.pattern.permute.xlu0 12
    %1096 = vperm.xlu0 %1095, %v149
    %v1097 = vpop.permute.xlu0 %1096
    %v1101 = vcombine.high %v1093, %v1093
    %1102 = vrot.lane.b32.xlu0 %v1093, 107
    %v1103 = vpop.permute.xlu0 %1102
    %1104 = vrot.lane.b32.xlu0 %v1101, 107
    %v1105 = vpop.permute.xlu0 %1104
    %1106 = vrot.lane.b32.xlu0 %v1094, 107
    %v1107 = vpop.permute.xlu0 %1106
    %vm1108 = vcmask 875520
    %v1109 = vsel %vm1108, %v1103, %v1105
    %v1110 = vsel %vm1108, %v1105, %v1107
    %v1113 = vmul.f32 %v1097, %v1109
    %v1114 = vmul.f32 %v1097, %v1110
    %v1115 = vadd.f32 %v1113, 0.0
    %v1116 = vadd.f32 %v1114, 0.0
    %v1117 = vld [vmem:[#allocation2] sm:$0xff]
    %v1118 = vld [vmem:[#allocation2 + $0x8] sm:$0xf]
    %1119 = vset.pattern.permute.xlu0 19
    %1120 = vperm.xlu0 %1119, %v149
    %v1121 = vpop.permute.xlu0 %1120
    %v1125 = vcombine.high %v1117, %v1117
    %1126 = vrot.lane.b32.xlu0 %v1117, 91
    %v1127 = vpop.permute.xlu0 %1126
    %1128 = vrot.lane.b32.xlu0 %v1125, 91
    %v1129 = vpop.permute.xlu0 %1128
    %1130 = vrot.lane.b32.xlu0 %v1118, 91
    %v1131 = vpop.permute.xlu0 %1130
    %vm1132 = vcmask 744448
    %v1133 = vsel %vm1132, %v1127, %v1129
    %v1134 = vsel %vm1132, %v1129, %v1131
    %v1137 = vmul.f32 %v1121, %v1133
    %v1138 = vmul.f32 %v1121, %v1134
    %v1139 = vadd.f32 %v1091, %v1137
    %v1140 = vadd.f32 %v1092, %v1138
    %v1141 = vld [vmem:[#allocation2] sm:$0xff]
    %v1142 = vld [vmem:[#allocation2 + $0x8] sm:$0xf]
    %1143 = vset.pattern.permute.xlu0 26
    %1144 = vperm.xlu0 %1143, %v149
    %v1145 = vpop.permute.xlu0 %1144
    %v1149 = vcombine.high %v1141, %v1141
    %1150 = vrot.lane.b32.xlu0 %v1141, 75
    %v1151 = vpop.permute.xlu0 %1150
    %1152 = vrot.lane.b32.xlu0 %v1149, 75
    %v1153 = vpop.permute.xlu0 %1152
    %1154 = vrot.lane.b32.xlu0 %v1142, 75
    %v1155 = vpop.permute.xlu0 %1154
    %vm1156 = vcmask 613376
    %v1157 = vsel %vm1156, %v1151, %v1153
    %v1158 = vsel %vm1156, %v1153, %v1155
    %v1161 = vmul.f32 %v1145, %v1157
    %v1162 = vmul.f32 %v1145, %v1158
    %v1163 = vadd.f32 %v1115, %v1161
    %v1164 = vadd.f32 %v1116, %v1162
    %v1165 = vld [vmem:[#allocation2] sm:$0xff]
    %v1166 = vld [vmem:[#allocation2 + $0x8] sm:$0xf]
    %1167 = vset.pattern.permute.xlu0 33
    %1168 = vperm.xlu0 %1167, %v149
    %v1169 = vpop.permute.xlu0 %1168
    %v1173 = vcombine.high %v1165, %v1165
    %1174 = vrot.lane.b32.xlu0 %v1165, 59
    %v1175 = vpop.permute.xlu0 %1174
    %1176 = vrot.lane.b32.xlu0 %v1173, 59
    %v1177 = vpop.permute.xlu0 %1176
    %1178 = vrot.lane.b32.xlu0 %v1166, 59
    %v1179 = vpop.permute.xlu0 %1178
    %vm1180 = vcmask 482304
    %v1181 = vsel %vm1180, %v1175, %v1177
    %v1182 = vsel %vm1180, %v1177, %v1179
    %v1185 = vmul.f32 %v1169, %v1181
    %v1186 = vmul.f32 %v1169, %v1182
    %v1187 = vadd.f32 %v1139, %v1185
    %v1188 = vadd.f32 %v1140, %v1186
    %v1189 = vld [vmem:[#allocation2] sm:$0xff]
    %v1190 = vld [vmem:[#allocation2 + $0x8] sm:$0xf]
    %1191 = vset.pattern.permute.xlu0 40
    %1192 = vperm.xlu0 %1191, %v149
    %v1193 = vpop.permute.xlu0 %1192
    %v1197 = vcombine.high %v1189, %v1189
    %1198 = vrot.lane.b32.xlu0 %v1189, 43
    %v1199 = vpop.permute.xlu0 %1198
    %1200 = vrot.lane.b32.xlu0 %v1197, 43
    %v1201 = vpop.permute.xlu0 %1200
    %1202 = vrot.lane.b32.xlu0 %v1190, 43
    %v1203 = vpop.permute.xlu0 %1202
    %vm1204 = vcmask 351232
    %v1205 = vsel %vm1204, %v1199, %v1201
    %v1206 = vsel %vm1204, %v1201, %v1203
    %v1209 = vmul.f32 %v1193, %v1205
    %v1210 = vmul.f32 %v1193, %v1206
    %v1211 = vadd.f32 %v1163, %v1209
    %v1212 = vadd.f32 %v1164, %v1210
    %v1213 = vld [vmem:[#allocation2] sm:$0xff]
    %v1214 = vld [vmem:[#allocation2 + $0x8] sm:$0xf]
    %1215 = vset.pattern.permute.xlu0 47
    %1216 = vperm.xlu0 %1215, %v149
    %v1217 = vpop.permute.xlu0 %1216
    %v1221 = vcombine.high %v1213, %v1213
    %1222 = vrot.lane.b32.xlu0 %v1213, 27
    %v1223 = vpop.permute.xlu0 %1222
    %1224 = vrot.lane.b32.xlu0 %v1221, 27
    %v1225 = vpop.permute.xlu0 %1224
    %1226 = vrot.lane.b32.xlu0 %v1214, 27
    %v1227 = vpop.permute.xlu0 %1226
    %vm1228 = vcmask 220160
    %v1229 = vsel %vm1228, %v1223, %v1225
    %v1230 = vsel %vm1228, %v1225, %v1227
    %v1233 = vmul.f32 %v1217, %v1229
    %v1234 = vmul.f32 %v1217, %v1230
    %v1235 = vadd.f32 %v1187, %v1233
    %v1236 = vadd.f32 %v1188, %v1234
    %v1237 = vadd.f32 %v1235, %v1211
    %v1238 = vadd.f32 %v1236, %v1212
    %v1239 = vmul.f32 %v1067, %v1237
    %v1240 = vmul.f32 %v1068, %v1238
    %v1241 = vadd.f32 %v873, %v1239
    %v1242 = vadd.f32 %v874, %v1240
    %vm1243 = vcmp.ge.s32.totalorder %v147, 4294967293
    %vm1244 = vcmp.ge.s32.totalorder %v148, 4294967293
    %vm1245 = vcmp.lt.s32.totalorder %v147, 13
    %vm1246 = vcmp.lt.s32.totalorder %v148, 13
    %vm1247 = vmand %vm1243, %vm1245
    %vm1248 = vmand %vm1244, %vm1246
    %v1249 = vsel %vm1247, 1, 0
    %v1250 = vsel %vm1248, 1, 0
    %v1251 = vcvt.s32.f32 %v1249
    %v1252 = vcvt.s32.f32 %v1250
    %v1253 = vld [vmem:[#allocation2] sm:$0xff]
    %v1254 = vld [vmem:[#allocation2 + $0x8] sm:$0xf]
    %1255 = vset.pattern.permute.xlu0 6
    %1256 = vperm.xlu0 %1255, %v149
    %v1257 = vpop.permute.xlu0 %1256
    %v1261 = vcombine.high %v1253, %v1253
    %1262 = vrot.lane.b32.xlu0 %v1253, 122
    %v1263 = vpop.permute.xlu0 %1262
    %1264 = vrot.lane.b32.xlu0 %v1261, 122
    %v1265 = vpop.permute.xlu0 %1264
    %1266 = vrot.lane.b32.xlu0 %v1254, 122
    %v1267 = vpop.permute.xlu0 %1266
    %vm1268 = vcmask 998400
    %v1269 = vsel %vm1268, %v1263, %v1265
    %v1270 = vsel %vm1268, %v1265, %v1267
    %v1273 = vmul.f32 %v1257, %v1269
    %v1274 = vmul.f32 %v1257, %v1270
    %v1275 = vadd.f32 %v1273, 0.0
    %v1276 = vadd.f32 %v1274, 0.0
    %v1277 = vld [vmem:[#allocation2] sm:$0xff]
    %v1278 = vld [vmem:[#allocation2 + $0x8] sm:$0xf]
    %1279 = vset.pattern.permute.xlu0 13
    %1280 = vperm.xlu0 %1279, %v149
    %v1281 = vpop.permute.xlu0 %1280
    %v1285 = vcombine.high %v1277, %v1277
    %1286 = vrot.lane.b32.xlu0 %v1277, 106
    %v1287 = vpop.permute.xlu0 %1286
    %1288 = vrot.lane.b32.xlu0 %v1285, 106
    %v1289 = vpop.permute.xlu0 %1288
    %1290 = vrot.lane.b32.xlu0 %v1278, 106
    %v1291 = vpop.permute.xlu0 %1290
    %vm1292 = vcmask 867328
    %v1293 = vsel %vm1292, %v1287, %v1289
    %v1294 = vsel %vm1292, %v1289, %v1291
    %v1297 = vmul.f32 %v1281, %v1293
    %v1298 = vmul.f32 %v1281, %v1294
    %v1299 = vadd.f32 %v1297, 0.0
    %v1300 = vadd.f32 %v1298, 0.0
    %v1301 = vld [vmem:[#allocation2] sm:$0xff]
    %v1302 = vld [vmem:[#allocation2 + $0x8] sm:$0xf]
    %1303 = vset.pattern.permute.xlu0 20
    %1304 = vperm.xlu0 %1303, %v149
    %v1305 = vpop.permute.xlu0 %1304
    %v1309 = vcombine.high %v1301, %v1301
    %1310 = vrot.lane.b32.xlu0 %v1301, 90
    %v1311 = vpop.permute.xlu0 %1310
    %1312 = vrot.lane.b32.xlu0 %v1309, 90
    %v1313 = vpop.permute.xlu0 %1312
    %1314 = vrot.lane.b32.xlu0 %v1302, 90
    %v1315 = vpop.permute.xlu0 %1314
    %vm1316 = vcmask 736256
    %v1317 = vsel %vm1316, %v1311, %v1313
    %v1318 = vsel %vm1316, %v1313, %v1315
    %v1321 = vmul.f32 %v1305, %v1317
    %v1322 = vmul.f32 %v1305, %v1318
    %v1323 = vadd.f32 %v1275, %v1321
    %v1324 = vadd.f32 %v1276, %v1322
    %v1325 = vld [vmem:[#allocation2] sm:$0xff]
    %v1326 = vld [vmem:[#allocation2 + $0x8] sm:$0xf]
    %1327 = vset.pattern.permute.xlu0 27
    %1328 = vperm.xlu0 %1327, %v149
    %v1329 = vpop.permute.xlu0 %1328
    %v1333 = vcombine.high %v1325, %v1325
    %1334 = vrot.lane.b32.xlu0 %v1325, 74
    %v1335 = vpop.permute.xlu0 %1334
    %1336 = vrot.lane.b32.xlu0 %v1333, 74
    %v1337 = vpop.permute.xlu0 %1336
    %1338 = vrot.lane.b32.xlu0 %v1326, 74
    %v1339 = vpop.permute.xlu0 %1338
    %vm1340 = vcmask 605184
    %v1341 = vsel %vm1340, %v1335, %v1337
    %v1342 = vsel %vm1340, %v1337, %v1339
    %v1345 = vmul.f32 %v1329, %v1341
    %v1346 = vmul.f32 %v1329, %v1342
    %v1347 = vadd.f32 %v1299, %v1345
    %v1348 = vadd.f32 %v1300, %v1346
    %v1349 = vld [vmem:[#allocation2] sm:$0xff]
    %v1350 = vld [vmem:[#allocation2 + $0x8] sm:$0xf]
    %1351 = vset.pattern.permute.xlu0 34
    %1352 = vperm.xlu0 %1351, %v149
    %v1353 = vpop.permute.xlu0 %1352
    %v1357 = vcombine.high %v1349, %v1349
    %1358 = vrot.lane.b32.xlu0 %v1349, 58
    %v1359 = vpop.permute.xlu0 %1358
    %1360 = vrot.lane.b32.xlu0 %v1357, 58
    %v1361 = vpop.permute.xlu0 %1360
    %1362 = vrot.lane.b32.xlu0 %v1350, 58
    %v1363 = vpop.permute.xlu0 %1362
    %vm1364 = vcmask 474112
    %v1365 = vsel %vm1364, %v1359, %v1361
    %v1366 = vsel %vm1364, %v1361, %v1363
    %v1369 = vmul.f32 %v1353, %v1365
    %v1370 = vmul.f32 %v1353, %v1366
    %v1371 = vadd.f32 %v1323, %v1369
    %v1372 = vadd.f32 %v1324, %v1370
    %v1373 = vld [vmem:[#allocation2] sm:$0xff]
    %v1374 = vld [vmem:[#allocation2 + $0x8] sm:$0xf]
    %1375 = vset.pattern.permute.xlu0 41
    %1376 = vperm.xlu0 %1375, %v149
    %v1377 = vpop.permute.xlu0 %1376
    %v1381 = vcombine.high %v1373, %v1373
    %1382 = vrot.lane.b32.xlu0 %v1373, 42
    %v1383 = vpop.permute.xlu0 %1382
    %1384 = vrot.lane.b32.xlu0 %v1381, 42
    %v1385 = vpop.permute.xlu0 %1384
    %1386 = vrot.lane.b32.xlu0 %v1374, 42
    %v1387 = vpop.permute.xlu0 %1386
    %vm1388 = vcmask 343040
    %v1389 = vsel %vm1388, %v1383, %v1385
    %v1390 = vsel %vm1388, %v1385, %v1387
    %v1393 = vmul.f32 %v1377, %v1389
    %v1394 = vmul.f32 %v1377, %v1390
    %v1395 = vadd.f32 %v1347, %v1393
    %v1396 = vadd.f32 %v1348, %v1394
    %v1397 = vld [vmem:[#allocation2] sm:$0xff]
    %v1398 = vld [vmem:[#allocation2 + $0x8] sm:$0xf]
    %1399 = vset.pattern.permute.xlu0 48
    %1400 = vperm.xlu0 %1399, %v149
    %v1401 = vpop.permute.xlu0 %1400
    %v1405 = vcombine.high %v1397, %v1397
    %1406 = vrot.lane.b32.xlu0 %v1397, 26
    %v1407 = vpop.permute.xlu0 %1406
    %1408 = vrot.lane.b32.xlu0 %v1405, 26
    %v1409 = vpop.permute.xlu0 %1408
    %1410 = vrot.lane.b32.xlu0 %v1398, 26
    %v1411 = vpop.permute.xlu0 %1410
    %vm1412 = vcmask 211968
    %v1413 = vsel %vm1412, %v1407, %v1409
    %v1414 = vsel %vm1412, %v1409, %v1411
    %v1417 = vmul.f32 %v1401, %v1413
    %v1418 = vmul.f32 %v1401, %v1414
    %v1419 = vadd.f32 %v1371, %v1417
    %v1420 = vadd.f32 %v1372, %v1418
    %v1421 = vadd.f32 %v1419, %v1395
    %v1422 = vadd.f32 %v1420, %v1396
    %v1423 = vmul.f32 %v1251, %v1421
    %v1424 = vmul.f32 %v1252, %v1422
    %v1425 = vadd.f32 %v1057, %v1423
    %v1426 = vadd.f32 %v1058, %v1424
    %v1427 = vadd.f32 %v1425, %v1241
    %v1428 = vadd.f32 %v1426, %v1242
    %v1431 = vrot.slane %v1427, 2
    %v1432 = vrot.slane %v1428, 2
    %v1435 = vadd.f32 %v1427, %v1431
    %v1436 = vadd.f32 %v1428, %v1432
    %s1437 = sld [smem:[#allocation3]]
    %v1438 = vstv %s1437
    %v1439 = vmul.f32 %v1438, %v1435
    %v1440 = vmul.f32 %v1438, %v1436
    %s1441 = sld [smem:[#allocation3 + $0x1]]
    %v1442 = vstv %s1441
    %v1443 = vadd.f32 %v1439, %v1442
    %v1444 = vadd.f32 %v1440, %v1442
    %v1445 = vxor.u32 %v1443, 2147483648
    %v1446 = vxor.u32 %v1444, 2147483648
    %v1447 = vmul.f32 %v1445, 1.442695
    %v1448 = vpow.pop %v1447
    %v1449 = vmul.f32 %v1446, 1.442695
    %v1450 = vpow.pop %v1449
    %v1451 = vadd.f32 %v1448, 1.0
    %v1452 = vadd.f32 %v1450, 1.0
    %v1453 = vrcp.pop %v1451
    %v1454 = vmul.f32 1.0, %v1453
    %v1455 = vrcp.pop %v1452
    %v1456 = vmul.f32 1.0, %v1455
    %v1459 = vcombine.low %v1454, %v1456
    %v1461 = vunpack.c.l.s4 1966171168
    %v1462 = vunpack.c.0.s8 %v1461
    %v1463 = vlaneseq
    %v1464 = vshrl.u32 %v1463, 7
    %v1465 = vsub.s32 %v1462, %v1464
    %v1466 = vrot.slane %v1459, %v1465
    %v1467 = vcombine.high %v1466, %v1466
    %v1469 = vunpack.c.l.s4 1966171168
    %v1470 = vunpack.c.0.s8 %v1469
    %v1471 = vlaneseq
    %v1472 = vshrl.u32 %v1471, 7
    %v1473 = vsub.s32 %v1470, %v1472
    %v1474 = vrot.slane %v1466, %v1473
    %v1476 = vunpack.c.l.s4 1966171168
    %v1477 = vunpack.c.0.s8 %v1476
    %v1478 = vlaneseq
    %v1479 = vshrl.u32 %v1478, 7
    %v1480 = vsub.s32 %v1477, %v1479
    %v1481 = vrot.slane %v1467, %v1480
    %v1482 = vlaneseq
    %v1483 = vshrl.u32 %v1482, 7
    %v1484 = vsub.s32 0, %v1483
    %v1485 = vrot.slane %v1474, %v1484
    %v1486 = vlaneseq
    %v1487 = vshrl.u32 %v1486, 7
    %v1488 = vsub.s32 1, %v1487
    %v1489 = vrot.slane %v1474, %v1488
    %v1490 = vlaneseq
    %v1491 = vshrl.u32 %v1490, 7
    %v1492 = vsub.s32 0, %v1491
    %v1493 = vrot.slane %v1481, %v1492
    %v1494 = vlaneseq
    %v1495 = vshrl.u32 %v1494, 7
    %v1496 = vsub.s32 1, %v1495
    %v1497 = vrot.slane %v1481, %v1496
    %v1498 = vcombine.low %v1485, %v1489
    %v1499 = vcombine.low %v1493, %v1497
    %v1502 = vmul.f32 %v27, %v1498
    %v1503 = vmul.f32 %v28, %v1499
    %1504 = vst [vmem:[%s3] sm:$0xff] %v1502
    %1505 = vst [vmem:[%s3 + $0x8] sm:$0xff] %v1503
    // Predicated region
    $region18: #{spatial_attn.1} parent=1 // pred_check
      _
    $region19: #{spatial_attn.1} parent=1 // pred_check_branch
      %1507 = sbr.rel (0) target = $region21
    $region20: #{spatial_attn.1} parent=1 // pred_region
      _
    $region21: #{spatial_attn.1} parent=1 // pred_fallthru
      _
    // Predicated region
    $region22: #{spatial_attn.1} parent=1 // pred_check
      _
    $region23: #{spatial_attn.1} parent=1 // pred_check_branch
      %1509 = sbr.rel (0) target = $region25
    $region24: #{spatial_attn.1} parent=1 // pred_region
      _
    $region25: #{spatial_attn.1} parent=1 // pred_fallthru
      _
    %1510 = vsyncpa [#allocation4], 1

</llo_original>
